<compile_context>
chip_gen: v5e
topology: v5e:2x2
jax: 0.10.0
libtpu: 0.0.40
codegen_flags: <defaults>
</compile_context>

<pallas_src>
import functools

import jax
import jax.numpy as jnp
from jax import lax
from jax.experimental import pallas as pl
from jax.experimental.pallas import tpu as pltpu

NODE_INPUTS = ["vel", "pos", "hed", "speed"]
EDGE_INPUTS = ["dist", "rel"]
NODE_OUTPUTS = {"vel": 2, "pos": 2, "hed": 2}
EDGE_OUTPUTS = {"e": 1}

H = 32          # logical hidden dim
HP = 128        # hidden dim padded to a full lane width
H1, H2 = 16, 8  # readout hidden sizes (canonical halving MLPReadout)
L = 2           # num GatedGCN layers
IN_NODE = 7     # vel(2)+pos(2)+hed(2)+speed(1)
IN_EDGE = 3     # dist(1)+rel(2)

_VMEM = pltpu.MemorySpace.VMEM


# ----------------------------------------------------------------------------
# The single fused forward kernel
# ----------------------------------------------------------------------------
def _forward_kernel(xn_ref, xe_ref, src_inc_ref, dst_inc_ref,
                    w_en_ref, b_en_ref, w_ee_ref, b_ee_ref,
                    w_edge_ref, w_u_ref, b_e_ref, b_h_ref,
                    w_nr1_ref, w_nr2_ref, w_nr3_ref, b_nr_ref,
                    w_er1_ref, w_er2_ref, w_er3_ref, b_er_ref,
                    node_out_ref, edge_out_ref):
    f32, bf16 = jnp.float32, jnp.bfloat16

    # ---- embeddings: one block-diagonal matmul produces h | (p,d) ----
    xn = xn_ref[...]                                                    # [N, HP] bf16
    hpd = jnp.dot(xn, w_en_ref[...], preferred_element_type=f32) + b_en_ref[...]
    h = hpd[:, 0:HP]            # [N, HP] f32 (h in lanes 0:32)
    pd = hpd[:, HP:2 * HP]      # [N, HP] f32 (p in lanes 0:32, d in lanes 32:64)

    xe = xe_ref[...]                                                    # [E, HP] bf16
    e = jnp.dot(xe, w_ee_ref[...], preferred_element_type=f32) + b_ee_ref[...]

    src_inc = src_inc_ref[...]        # [E, N] bf16 one-hot(src)
    dst_inc = dst_inc_ref[...]        # [E, N] bf16 one-hot(dst)

    # ---- GatedGCN layers (unrolled; h/e stay resident between layers) ----
    for l in range(L):
        w_edge = w_edge_ref[l]                       # [3*HP, 2*HP]  [[A;B;C] | [0;V;0]]
        w_u = w_u_ref[l]                             # [HP, HP]
        be = b_e_ref[pl.ds(l, 1), :]                 # [1, HP]
        bh = b_h_ref[pl.ds(l, 1), :]                 # [1, HP]

        h_b = h.astype(bf16)
        # edge-endpoint gathers as MXU matmuls with the 0/1 incidence matrices.
        h_src = jnp.dot(src_inc, h_b, preferred_element_type=f32)       # [E, HP]
        h_dst = jnp.dot(dst_inc, h_b, preferred_element_type=f32)       # [E, HP]

        # fused edge matmul: e_hat_pre = A h_dst + B h_src + C e ; vh = V h_src
        # (bf16 BEFORE concat: halves the concat temporary's bytes/vregs)
        cat = jnp.concatenate(
            [h_dst.astype(bf16), h_src.astype(bf16), e.astype(bf16)], axis=1)
        big = jnp.dot(cat, w_edge, preferred_element_type=f32)          # [E, 2*HP]
        e_hat = big[:, 0:HP] + be
        vh = big[:, HP:2 * HP]
        sigma = jax.nn.sigmoid(e_hat)

        # dst aggregation: one transposed-contraction matmul (dst_inc^T @ payload)
        # yields both numerator and denominator; no separate [N,E] slab needed.
        payload = jnp.concatenate(
            [(sigma * vh).astype(bf16), sigma.astype(bf16)], axis=1)    # [E, 2*HP]
        agg = lax.dot_general(dst_inc, payload,
                              dimension_numbers=(((0,), (0,)), ((), ())),
                              preferred_element_type=f32)               # [N, 2*HP]

        h_hat = (jnp.dot(h_b, w_u, preferred_element_type=f32) + bh
                 + agg[:, 0:HP]
                 * pl.reciprocal(agg[:, HP:2 * HP] + 1e-6, approx=True))

        h = h + jnp.maximum(h_hat, 0.0)   # residual + ReLU (no batch norm)
        e = e + jnp.maximum(e_hat, 0.0)
        # TODO(synk): GatedGCNLayerSF's p/d update rule is defined outside the
        # provided module; p and d are carried through the layers unchanged.

    # ---- node readout: vel/pos/hed heads packed block-diagonally over [h|p,d] ----
    xr = jnp.concatenate([h.astype(bf16), pd.astype(bf16)], axis=1)     # [N, 2*HP]
    y = jnp.dot(xr, w_nr1_ref[...], preferred_element_type=f32) + b_nr_ref[pl.ds(0, 1), :]
    y = jnp.maximum(y, 0.0)
    y = jnp.dot(y.astype(bf16), w_nr2_ref[...], preferred_element_type=f32) + b_nr_ref[pl.ds(1, 1), :]
    y = jnp.maximum(y, 0.0)
    y = jnp.dot(y.astype(bf16), w_nr3_ref[...], preferred_element_type=f32) + b_nr_ref[pl.ds(2, 1), :]
    node_out_ref[...] = y.astype(node_out_ref.dtype)   # lane-dense [N, 128] slab

    # ---- edge readout (consumes e while VMEM-resident) ----
    z = jnp.dot(e.astype(bf16), w_er1_ref[...], preferred_element_type=f32) + b_er_ref[pl.ds(0, 1), :]
    z = jnp.maximum(z, 0.0)
    z = jnp.dot(z.astype(bf16), w_er2_ref[...], preferred_element_type=f32) + b_er_ref[pl.ds(1, 1), :]
    z = jnp.maximum(z, 0.0)
    z = jnp.dot(z.astype(bf16), w_er3_ref[...], preferred_element_type=f32) + b_er_ref[pl.ds(2, 1), :]
    edge_out_ref[...] = z.astype(edge_out_ref.dtype)   # lane-dense [E, 128] slab


# ----------------------------------------------------------------------------
# Parameter initialization (deterministic, PyTorch-Linear-style uniform init)
# ----------------------------------------------------------------------------
def init_linear(key, fan_in, fan_out):
    kw, kb = jax.random.split(key)
    bound = 1.0 / jnp.sqrt(fan_in)
    w = jax.random.uniform(kw, (fan_in, fan_out), jnp.float32, -bound, bound)
    b = jax.random.uniform(kb, (fan_out,), jnp.float32, -bound, bound)
    return w, b


def init_params(key, num_layers=L):
    keys = iter(jax.random.split(key, 64))
    p = {}
    p["embedding_h"] = init_linear(next(keys), IN_NODE, H)
    p["embedding_p"] = init_linear(next(keys), 2, H)
    p["embedding_d"] = init_linear(next(keys), 2, H)
    p["embedding_e"] = init_linear(next(keys), IN_EDGE, H)

    layers = []
    for _ in range(num_layers):
        lp = {}
        for name in ["A", "B", "C", "U", "V"]:
            w, _ = init_linear(next(keys), H, H)
            lp[name] = w
        _, lp["be"] = init_linear(next(keys), H, H)
        _, lp["bh"] = init_linear(next(keys), H, H)
        layers.append(lp)
    p["layers"] = layers

    # TODO(synk): MLPReadout's exact architecture is not in the provided source;
    # using the canonical 2-halving-hidden-layer readout (32->16->8->out).
    def init_readout(out_dim):
        return [init_linear(next(keys), H, H1),
                init_linear(next(keys), H1, H2),
                init_linear(next(keys), H2, out_dim)]

    p["mlp_nodes"] = {s: init_readout(dim) for s, dim in NODE_OUTPUTS.items()}
    p["mlp_edges"] = {s: init_readout(dim) for s, dim in EDGE_OUTPUTS.items()}
    return p


# ----------------------------------------------------------------------------
# One-time packing: zero-pad to 128 lanes, stack layers, block-diag readouts,
# cast MXU weights to bf16 (biases stay f32).
# ----------------------------------------------------------------------------
def _place(dst, w, r0, c0):
    return dst.at[r0:r0 + w.shape[0], c0:c0 + w.shape[1]].set(w)


def pack_params(p):
    f32, bf16 = jnp.float32, jnp.bfloat16
    packed = {}

    # node embeddings: output lanes = [h (0:128) | p (128:160), d (160:192)]
    w_en = jnp.zeros((HP, 2 * HP), f32)
    b_en = jnp.zeros((1, 2 * HP), f32)
    (wh, bh_), (wp, bp_), (wd, bd_) = (p["embedding_h"], p["embedding_p"], p["embedding_d"])
    w_en = _place(w_en, wh, 0, 0)
    w_en = _place(w_en, wp, IN_NODE, HP)
    w_en = _place(w_en, wd, IN_NODE + 2, HP + H)
    b_en = _place(b_en, bh_[None, :], 0, 0)
    b_en = _place(b_en, bp_[None, :], 0, HP)
    b_en = _place(b_en, bd_[None, :], 0, HP + H)
    packed["w_en"], packed["b_en"] = w_en.astype(bf16), b_en

    we, be_ = p["embedding_e"]
    packed["w_ee"] = _place(jnp.zeros((HP, HP), f32), we, 0, 0).astype(bf16)
    packed["b_ee"] = _place(jnp.zeros((1, HP), f32), be_[None, :], 0, 0)

    # GatedGCN layers, stacked over L
    w_edge = jnp.zeros((L, 3 * HP, 2 * HP), f32)
    w_u = jnp.zeros((L, HP, HP), f32)
    b_e = jnp.zeros((L, HP), f32)
    b_h = jnp.zeros((L, HP), f32)
    for l, lp in enumerate(p["layers"]):
        wl = jnp.zeros((3 * HP, 2 * HP), f32)
        wl = _place(wl, lp["A"], 0, 0)            # h_dst block -> e_hat
        wl = _place(wl, lp["B"], HP, 0)           # h_src block -> e_hat
        wl = _place(wl, lp["C"], 2 * HP, 0)       # e     block -> e_hat
        wl = _place(wl, lp["V"], HP, HP)          # h_src block -> V h_src
        w_edge = w_edge.at[l].set(wl)
        w_u = w_u.at[l].set(_place(jnp.zeros((HP, HP), f32), lp["U"], 0, 0))
        b_e = b_e.at[l, :H].set(lp["be"])
        b_h = b_h.at[l, :H].set(lp["bh"])
    packed["w_edge"], packed["w_u"] = w_edge.astype(bf16), w_u.astype(bf16)
    packed["b_e"], packed["b_h"] = b_e, b_h

    # node readout: 3 heads packed block-diagonally.
    # Head inputs inside xr = [h | p,d]: vel<-h rows 0:32, pos<-p rows 128:160,
    # hed<-d rows 160:192.
    w1 = jnp.zeros((2 * HP, HP), f32)
    w2 = jnp.zeros((HP, HP), f32)
    w3 = jnp.zeros((HP, HP), f32)
    b_nr = jnp.zeros((3, HP), f32)
    row0 = {"vel": 0, "pos": HP, "hed": HP + H}
    for k, s in enumerate(["vel", "pos", "hed"]):
        (w0k, b0k), (w1k, b1k), (w2k, b2k) = p["mlp_nodes"][s]
        w1 = _place(w1, w0k, row0[s], k * H1)
        w2 = _place(w2, w1k, k * H1, k * H2)
        w3 = _place(w3, w2k, k * H2, k * 2)
        b_nr = b_nr.at[0, k * H1:k * H1 + H1].set(b0k)
        b_nr = b_nr.at[1, k * H2:k * H2 + H2].set(b1k)
        b_nr = b_nr.at[2, k * 2:k * 2 + 2].set(b2k)
    packed["w_nr1"], packed["w_nr2"], packed["w_nr3"] = (w1.astype(bf16), w2.astype(bf16), w3.astype(bf16))
    packed["b_nr"] = b_nr

    # edge readout
    (w0, b0), (w1e, b1e), (w2e, b2e) = p["mlp_edges"]["e"]
    packed["w_er1"] = _place(jnp.zeros((HP, HP), f32), w0, 0, 0).astype(bf16)
    packed["w_er2"] = _place(jnp.zeros((HP, HP), f32), w1e, 0, 0).astype(bf16)
    packed["w_er3"] = _place(jnp.zeros((HP, HP), f32), w2e, 0, 0).astype(bf16)
    b_er = jnp.zeros((3, HP), f32)
    b_er = b_er.at[0, :H1].set(b0)
    b_er = b_er.at[1, :H2].set(b1e)
    b_er = b_er.at[2, :1].set(b2e)
    packed["b_er"] = b_er
    return packed


# ----------------------------------------------------------------------------
# Scoped-VMEM limit sized from the actual resident footprint (+ headroom).
# ----------------------------------------------------------------------------
def _vmem_limit_bytes(n, m):
    inc = 2 * m * n * 2                               # two [E,N] bf16 incidence slabs
    io = (n + m) * HP * (2 + 4)                       # bf16 inputs + f32 outputs
    act = 4 * HP * (8 * m + 6 * n)                    # f32 activation working set
    weights = 2 * (2 * HP * HP + HP * HP + L * (3 * HP * 2 * HP + HP * HP)
                   + 2 * HP * HP + 3 * HP * HP) + 4 * 16 * HP
    est = inc + io + act + weights
    # generous 2x + 4 MiB headroom; clamp to [32 MiB, 64 MiB] (v7x physical cap)
    return int(min(max(2 * est + (4 << 20), 32 << 20), 64 << 20))


# ----------------------------------------------------------------------------
# GCNNetSF forward (single fused pallas_call)
# ----------------------------------------------------------------------------
@functools.partial(jax.jit, static_argnums=(5,))
def gcn_net_sf_forward(packed, node_feats, edge_feats, src, dst, n_nodes):
    n = node_feats["vel"].shape[0]
    m = src.shape[0]

    # one-time input packing (lane-padded slabs, shipped as bf16 — the kernel
    # feeds them straight to the MXU anyway)
    d_feat = jnp.round(node_feats["hed"]) * node_feats["speed"]
    x_h = jnp.concatenate([node_feats[k] for k in NODE_INPUTS], axis=-1)   # [N, 7]
    x_node = jnp.zeros((n, HP), jnp.float32)
    x_node = x_node.at[:, :IN_NODE].set(x_h)
    x_node = x_node.at[:, IN_NODE:IN_NODE + 2].set(node_feats["pos"])
    x_node = x_node.at[:, IN_NODE + 2:IN_NODE + 4].set(d_feat)
    x_node = x_node.astype(jnp.bfloat16)

    x_e = jnp.concatenate([edge_feats[k] for k in EDGE_INPUTS], axis=-1)   # [E, 3]
    x_edge = (jnp.zeros((m, HP), jnp.float32)
              .at[:, :IN_EDGE].set(x_e).astype(jnp.bfloat16))

    # incidence matrices built ONCE (0/1 -> exact in bf16); all per-layer
    # gathers/aggregations happen inside the kernel as MXU matmuls.
    src_inc = jax.nn.one_hot(src, n_nodes, dtype=jnp.bfloat16)             # [E, N]
    dst_inc = jax.nn.one_hot(dst, n_nodes, dtype=jnp.bfloat16)             # [E, N]

    node_out, edge_out = pl.pallas_call(
        _forward_kernel,
        out_shape=(jax.ShapeDtypeStruct((n, HP), jnp.float32),
                   jax.ShapeDtypeStruct((m, HP), jnp.float32)),
        in_specs=[pl.BlockSpec(memory_space=_VMEM)] * 20,
        out_specs=(pl.BlockSpec(memory_space=_VMEM),
                   pl.BlockSpec(memory_space=_VMEM)),
        compiler_params=pltpu.CompilerParams(
            vmem_limit_bytes=_vmem_limit_bytes(n, m)),
    )(x_node, x_edge, src_inc, dst_inc,
      packed["w_en"], packed["b_en"], packed["w_ee"], packed["b_ee"],
      packed["w_edge"], packed["w_u"], packed["b_e"], packed["b_h"],
      packed["w_nr1"], packed["w_nr2"], packed["w_nr3"], packed["b_nr"],
      packed["w_er1"], packed["w_er2"], packed["w_er3"], packed["b_er"])

    h_out = {"vel": node_out[:, 0:2], "pos": node_out[:, 2:4], "hed": node_out[:, 4:6]}
    e_out = {"e": edge_out[:, 0:1]}
    return h_out, e_out


# ----------------------------------------------------------------------------
if __name__ == "__main__":
    key = jax.random.PRNGKey(0)
    k_param, k_node, k_edge, k_graph = jax.random.split(key, 4)

    N, E = 16, 32  # nodes, edges

    kn = jax.random.split(k_node, 4)
    node_feats = {
        "vel": jax.random.normal(kn[0], (N, 2), jnp.float32),
        "pos": jax.random.normal(kn[1], (N, 2), jnp.float32),
        "hed": jax.random.normal(kn[2], (N, 2), jnp.float32),
        "speed": jax.random.uniform(kn[3], (N, 1), jnp.float32),
    }
    ke = jax.random.split(k_edge, 2)
    edge_feats = {
        "dist": jax.random.uniform(ke[0], (E, 1), jnp.float32),
        "rel": jax.random.normal(ke[1], (E, 2), jnp.float32),
    }
    kg = jax.random.split(k_graph, 2)
    src = jax.random.randint(kg[0], (E,), 0, N)
    dst = jax.random.randint(kg[1], (E,), 0, N)

    params = init_params(k_param, num_layers=L)
    packed = pack_params(params)

    h_out, e_out = gcn_net_sf_forward(packed, node_feats, edge_feats, src, dst, N)
    jax.block_until_ready((h_out, e_out))

    assert h_out["vel"].shape == (N, 2)
    assert h_out["pos"].shape == (N, 2)
    assert h_out["hed"].shape == (N, 2)
    assert e_out["e"].shape == (E, 1)
    assert bool(jnp.isfinite(h_out["vel"]).all())
    assert bool(jnp.isfinite(h_out["pos"]).all())
    assert bool(jnp.isfinite(h_out["hed"]).all())
    assert bool(jnp.isfinite(e_out["e"]).all())
    print("KERNEL_OK")
</pallas_src>

<mosaic_0001>
module attributes {stable_mosaic.version = 11 : i64} {
  func.func @_forward_kernel(%arg0: memref<16x128xbf16, #tpu.memory_space<vmem>>, %arg1: memref<32x128xbf16, #tpu.memory_space<vmem>>, %arg2: memref<32x16xbf16, #tpu.memory_space<vmem>>, %arg3: memref<32x16xbf16, #tpu.memory_space<vmem>>, %arg4: memref<128x256xbf16, #tpu.memory_space<vmem>>, %arg5: memref<1x256xf32, #tpu.memory_space<vmem>>, %arg6: memref<128x128xbf16, #tpu.memory_space<vmem>>, %arg7: memref<1x128xf32, #tpu.memory_space<vmem>>, %arg8: memref<2x384x256xbf16, #tpu.memory_space<vmem>>, %arg9: memref<2x128x128xbf16, #tpu.memory_space<vmem>>, %arg10: memref<2x128xf32, #tpu.memory_space<vmem>>, %arg11: memref<2x128xf32, #tpu.memory_space<vmem>>, %arg12: memref<256x128xbf16, #tpu.memory_space<vmem>>, %arg13: memref<128x128xbf16, #tpu.memory_space<vmem>>, %arg14: memref<128x128xbf16, #tpu.memory_space<vmem>>, %arg15: memref<3x128xf32, #tpu.memory_space<vmem>>, %arg16: memref<128x128xbf16, #tpu.memory_space<vmem>>, %arg17: memref<128x128xbf16, #tpu.memory_space<vmem>>, %arg18: memref<128x128xbf16, #tpu.memory_space<vmem>>, %arg19: memref<3x128xf32, #tpu.memory_space<vmem>>, %arg20: memref<16x128xf32, #tpu.memory_space<vmem>>, %arg21: memref<32x128xf32, #tpu.memory_space<vmem>>) attributes {dimension_semantics = [], scalar_prefetch = 0 : i64, scratch_operands = 0 : i64, tpu.core_type = #tpu.core_type<tc>} {
    %c0 = arith.constant 0 : index
    %c0_0 = arith.constant 0 : index
    %0 = vector.load %arg0[%c0, %c0_0] : memref<16x128xbf16, #tpu.memory_space<vmem>>, vector<16x128xbf16>
    %c0_1 = arith.constant 0 : index
    %c0_2 = arith.constant 0 : index
    %1 = vector.load %arg4[%c0_1, %c0_2] : memref<128x256xbf16, #tpu.memory_space<vmem>>, vector<128x256xbf16>
    %cst = arith.constant dense<0.000000e+00> : vector<16x256xf32>
    %2 = tpu.matmul %0, %1, %cst {dimension_numbers = #tpu.dot_dimension_numbers<[1], [0], [0], [1], [0, 0, 1, 1], [], []>} : vector<16x128xbf16>, vector<128x256xbf16>, vector<16x256xf32> -> vector<16x256xf32>
    %c0_3 = arith.constant 0 : index
    %c0_4 = arith.constant 0 : index
    %3 = vector.load %arg5[%c0_3, %c0_4] : memref<1x256xf32, #tpu.memory_space<vmem>>, vector<1x256xf32>
    %4 = vector.broadcast %3 : vector<1x256xf32> to vector<16x256xf32>
    %5 = arith.addf %2, %4 : vector<16x256xf32>
    %6 = vector.extract_strided_slice %5 {offsets = [0, 0], sizes = [16, 128], strides = [1, 1]} : vector<16x256xf32> to vector<16x128xf32>
    %7 = vector.extract_strided_slice %5 {offsets = [0, 128], sizes = [16, 128], strides = [1, 1]} : vector<16x256xf32> to vector<16x128xf32>
    %c0_5 = arith.constant 0 : index
    %c0_6 = arith.constant 0 : index
    %8 = vector.load %arg1[%c0_5, %c0_6] : memref<32x128xbf16, #tpu.memory_space<vmem>>, vector<32x128xbf16>
    %c0_7 = arith.constant 0 : index
    %c0_8 = arith.constant 0 : index
    %9 = vector.load %arg6[%c0_7, %c0_8] : memref<128x128xbf16, #tpu.memory_space<vmem>>, vector<128x128xbf16>
    %cst_9 = arith.constant dense<0.000000e+00> : vector<32x128xf32>
    %10 = tpu.matmul %8, %9, %cst_9 {dimension_numbers = #tpu.dot_dimension_numbers<[1], [0], [0], [1], [0, 0, 1, 1], [], []>} : vector<32x128xbf16>, vector<128x128xbf16>, vector<32x128xf32> -> vector<32x128xf32>
    %c0_10 = arith.constant 0 : index
    %c0_11 = arith.constant 0 : index
    %11 = vector.load %arg7[%c0_10, %c0_11] : memref<1x128xf32, #tpu.memory_space<vmem>>, vector<1x128xf32>
    %12 = vector.broadcast %11 : vector<1x128xf32> to vector<32x128xf32>
    %13 = arith.addf %10, %12 : vector<32x128xf32>
    %c0_12 = arith.constant 0 : index
    %c0_13 = arith.constant 0 : index
    %14 = vector.load %arg2[%c0_12, %c0_13] : memref<32x16xbf16, #tpu.memory_space<vmem>>, vector<32x16xbf16>
    %c0_14 = arith.constant 0 : index
    %c0_15 = arith.constant 0 : index
    %15 = vector.load %arg3[%c0_14, %c0_15] : memref<32x16xbf16, #tpu.memory_space<vmem>>, vector<32x16xbf16>
    %c0_16 = arith.constant 0 : index
    %c0_17 = arith.constant 0 : index
    %c0_18 = arith.constant 0 : index
    %16 = vector.load %arg8[%c0_16, %c0_17, %c0_18] : memref<2x384x256xbf16, #tpu.memory_space<vmem>>, vector<1x384x256xbf16>
    %17 = vector.shape_cast %16 : vector<1x384x256xbf16> to vector<384x256xbf16>
    %c0_19 = arith.constant 0 : index
    %c0_20 = arith.constant 0 : index
    %c0_21 = arith.constant 0 : index
    %18 = vector.load %arg9[%c0_19, %c0_20, %c0_21] : memref<2x128x128xbf16, #tpu.memory_space<vmem>>, vector<1x128x128xbf16>
    %19 = vector.shape_cast %18 : vector<1x128x128xbf16> to vector<128x128xbf16>
    %c0_22 = arith.constant 0 : index
    %c0_23 = arith.constant 0 : index
    %20 = vector.load %arg10[%c0_22, %c0_23] : memref<2x128xf32, #tpu.memory_space<vmem>>, vector<1x128xf32>
    %c0_24 = arith.constant 0 : index
    %c0_25 = arith.constant 0 : index
    %21 = vector.load %arg11[%c0_24, %c0_25] : memref<2x128xf32, #tpu.memory_space<vmem>>, vector<1x128xf32>
    %22 = arith.truncf %6 : vector<16x128xf32> to vector<16x128xbf16>
    %cst_26 = arith.constant dense<0.000000e+00> : vector<32x128xf32>
    %23 = tpu.matmul %14, %22, %cst_26 {dimension_numbers = #tpu.dot_dimension_numbers<[1], [0], [0], [1], [0, 0, 1, 1], [], []>} : vector<32x16xbf16>, vector<16x128xbf16>, vector<32x128xf32> -> vector<32x128xf32>
    %cst_27 = arith.constant dense<0.000000e+00> : vector<32x128xf32>
    %24 = tpu.matmul %15, %22, %cst_27 {dimension_numbers = #tpu.dot_dimension_numbers<[1], [0], [0], [1], [0, 0, 1, 1], [], []>} : vector<32x16xbf16>, vector<16x128xbf16>, vector<32x128xf32> -> vector<32x128xf32>
    %25 = arith.truncf %24 : vector<32x128xf32> to vector<32x128xbf16>
    %26 = arith.truncf %23 : vector<32x128xf32> to vector<32x128xbf16>
    %27 = arith.truncf %13 : vector<32x128xf32> to vector<32x128xbf16>
    %28 = tpu.concatenate %25, %26, %27 in 1 : vector<32x128xbf16>, vector<32x128xbf16>, vector<32x128xbf16> -> vector<32x384xbf16>
    %cst_28 = arith.constant dense<0.000000e+00> : vector<32x256xf32>
    %29 = tpu.matmul %28, %17, %cst_28 {dimension_numbers = #tpu.dot_dimension_numbers<[1], [0], [0], [1], [0, 0, 1, 1], [], []>} : vector<32x384xbf16>, vector<384x256xbf16>, vector<32x256xf32> -> vector<32x256xf32>
    %30 = vector.extract_strided_slice %29 {offsets = [0, 0], sizes = [32, 128], strides = [1, 1]} : vector<32x256xf32> to vector<32x128xf32>
    %31 = vector.broadcast %20 : vector<1x128xf32> to vector<32x128xf32>
    %32 = arith.addf %30, %31 : vector<32x128xf32>
    %33 = vector.extract_strided_slice %29 {offsets = [0, 128], sizes = [32, 128], strides = [1, 1]} : vector<32x256xf32> to vector<32x128xf32>
    %34 = arith.negf %32 : vector<32x128xf32>
    %35 = math.exp %34 : vector<32x128xf32>
    %cst_29 = arith.constant 1.000000e+00 : f32
    %36 = vector.broadcast %cst_29 : f32 to vector<32x128xf32>
    %37 = arith.addf %36, %35 : vector<32x128xf32>
    %38 = arith.divf %36, %37 : vector<32x128xf32>
    %39 = arith.mulf %38, %33 : vector<32x128xf32>
    %40 = arith.truncf %39 : vector<32x128xf32> to vector<32x128xbf16>
    %41 = arith.truncf %38 : vector<32x128xf32> to vector<32x128xbf16>
    %42 = tpu.concatenate %40, %41 in 1 : vector<32x128xbf16>, vector<32x128xbf16> -> vector<32x256xbf16>
    %cst_30 = arith.constant dense<0.000000e+00> : vector<16x256xf32>
    %43 = tpu.matmul %15, %42, %cst_30 {dimension_numbers = #tpu.dot_dimension_numbers<[0], [0], [1], [1], [0, 1, 1, 1], [], []>} : vector<32x16xbf16>, vector<32x256xbf16>, vector<16x256xf32> -> vector<16x256xf32>
    %cst_31 = arith.constant dense<0.000000e+00> : vector<16x128xf32>
    %44 = tpu.matmul %22, %19, %cst_31 {dimension_numbers = #tpu.dot_dimension_numbers<[1], [0], [0], [1], [0, 0, 1, 1], [], []>} : vector<16x128xbf16>, vector<128x128xbf16>, vector<16x128xf32> -> vector<16x128xf32>
    %45 = vector.broadcast %21 : vector<1x128xf32> to vector<16x128xf32>
    %46 = arith.addf %44, %45 : vector<16x128xf32>
    %47 = vector.extract_strided_slice %43 {offsets = [0, 0], sizes = [16, 128], strides = [1, 1]} : vector<16x256xf32> to vector<16x128xf32>
    %48 = vector.extract_strided_slice %43 {offsets = [0, 128], sizes = [16, 128], strides = [1, 1]} : vector<16x256xf32> to vector<16x128xf32>
    %cst_32 = arith.constant 9.99999997E-7 : f32
    %49 = vector.broadcast %cst_32 : f32 to vector<16x128xf32>
    %50 = arith.addf %48, %49 : vector<16x128xf32>
    %51 = tpu.reciprocal %50 {approx = true} : vector<16x128xf32> -> vector<16x128xf32>
    %52 = arith.mulf %47, %51 : vector<16x128xf32>
    %53 = arith.addf %46, %52 : vector<16x128xf32>
    %cst_33 = arith.constant 0.000000e+00 : f32
    %54 = vector.broadcast %cst_33 : f32 to vector<16x128xf32>
    %55 = arith.maximumf %53, %54 : vector<16x128xf32>
    %56 = arith.addf %6, %55 : vector<16x128xf32>
    %cst_34 = arith.constant 0.000000e+00 : f32
    %57 = vector.broadcast %cst_34 : f32 to vector<32x128xf32>
    %58 = arith.maximumf %32, %57 : vector<32x128xf32>
    %59 = arith.addf %13, %58 : vector<32x128xf32>
    %c1 = arith.constant 1 : index
    %c0_35 = arith.constant 0 : index
    %c0_36 = arith.constant 0 : index
    %60 = vector.load %arg8[%c1, %c0_35, %c0_36] : memref<2x384x256xbf16, #tpu.memory_space<vmem>>, vector<1x384x256xbf16>
    %61 = vector.shape_cast %60 : vector<1x384x256xbf16> to vector<384x256xbf16>
    %c1_37 = arith.constant 1 : index
    %c0_38 = arith.constant 0 : index
    %c0_39 = arith.constant 0 : index
    %62 = vector.load %arg9[%c1_37, %c0_38, %c0_39] : memref<2x128x128xbf16, #tpu.memory_space<vmem>>, vector<1x128x128xbf16>
    %63 = vector.shape_cast %62 : vector<1x128x128xbf16> to vector<128x128xbf16>
    %c1_40 = arith.constant 1 : index
    %c0_41 = arith.constant 0 : index
    %64 = vector.load %arg10[%c1_40, %c0_41] : memref<2x128xf32, #tpu.memory_space<vmem>>, vector<1x128xf32>
    %c1_42 = arith.constant 1 : index
    %c0_43 = arith.constant 0 : index
    %65 = vector.load %arg11[%c1_42, %c0_43] : memref<2x128xf32, #tpu.memory_space<vmem>>, vector<1x128xf32>
    %66 = arith.truncf %56 : vector<16x128xf32> to vector<16x128xbf16>
    %cst_44 = arith.constant dense<0.000000e+00> : vector<32x128xf32>
    %67 = tpu.matmul %14, %66, %cst_44 {dimension_numbers = #tpu.dot_dimension_numbers<[1], [0], [0], [1], [0, 0, 1, 1], [], []>} : vector<32x16xbf16>, vector<16x128xbf16>, vector<32x128xf32> -> vector<32x128xf32>
    %cst_45 = arith.constant dense<0.000000e+00> : vector<32x128xf32>
    %68 = tpu.matmul %15, %66, %cst_45 {dimension_numbers = #tpu.dot_dimension_numbers<[1], [0], [0], [1], [0, 0, 1, 1], [], []>} : vector<32x16xbf16>, vector<16x128xbf16>, vector<32x128xf32> -> vector<32x128xf32>
    %69 = arith.truncf %68 : vector<32x128xf32> to vector<32x128xbf16>
    %70 = arith.truncf %67 : vector<32x128xf32> to vector<32x128xbf16>
    %71 = arith.truncf %59 : vector<32x128xf32> to vector<32x128xbf16>
    %72 = tpu.concatenate %69, %70, %71 in 1 : vector<32x128xbf16>, vector<32x128xbf16>, vector<32x128xbf16> -> vector<32x384xbf16>
    %cst_46 = arith.constant dense<0.000000e+00> : vector<32x256xf32>
    %73 = tpu.matmul %72, %61, %cst_46 {dimension_numbers = #tpu.dot_dimension_numbers<[1], [0], [0], [1], [0, 0, 1, 1], [], []>} : vector<32x384xbf16>, vector<384x256xbf16>, vector<32x256xf32> -> vector<32x256xf32>
    %74 = vector.extract_strided_slice %73 {offsets = [0, 0], sizes = [32, 128], strides = [1, 1]} : vector<32x256xf32> to vector<32x128xf32>
    %75 = vector.broadcast %64 : vector<1x128xf32> to vector<32x128xf32>
    %76 = arith.addf %74, %75 : vector<32x128xf32>
    %77 = vector.extract_strided_slice %73 {offsets = [0, 128], sizes = [32, 128], strides = [1, 1]} : vector<32x256xf32> to vector<32x128xf32>
    %78 = arith.negf %76 : vector<32x128xf32>
    %79 = math.exp %78 : vector<32x128xf32>
    %cst_47 = arith.constant 1.000000e+00 : f32
    %80 = vector.broadcast %cst_47 : f32 to vector<32x128xf32>
    %81 = arith.addf %80, %79 : vector<32x128xf32>
    %82 = arith.divf %80, %81 : vector<32x128xf32>
    %83 = arith.mulf %82, %77 : vector<32x128xf32>
    %84 = arith.truncf %83 : vector<32x128xf32> to vector<32x128xbf16>
    %85 = arith.truncf %82 : vector<32x128xf32> to vector<32x128xbf16>
    %86 = tpu.concatenate %84, %85 in 1 : vector<32x128xbf16>, vector<32x128xbf16> -> vector<32x256xbf16>
    %cst_48 = arith.constant dense<0.000000e+00> : vector<16x256xf32>
    %87 = tpu.matmul %15, %86, %cst_48 {dimension_numbers = #tpu.dot_dimension_numbers<[0], [0], [1], [1], [0, 1, 1, 1], [], []>} : vector<32x16xbf16>, vector<32x256xbf16>, vector<16x256xf32> -> vector<16x256xf32>
    %cst_49 = arith.constant dense<0.000000e+00> : vector<16x128xf32>
    %88 = tpu.matmul %66, %63, %cst_49 {dimension_numbers = #tpu.dot_dimension_numbers<[1], [0], [0], [1], [0, 0, 1, 1], [], []>} : vector<16x128xbf16>, vector<128x128xbf16>, vector<16x128xf32> -> vector<16x128xf32>
    %89 = vector.broadcast %65 : vector<1x128xf32> to vector<16x128xf32>
    %90 = arith.addf %88, %89 : vector<16x128xf32>
    %91 = vector.extract_strided_slice %87 {offsets = [0, 0], sizes = [16, 128], strides = [1, 1]} : vector<16x256xf32> to vector<16x128xf32>
    %92 = vector.extract_strided_slice %87 {offsets = [0, 128], sizes = [16, 128], strides = [1, 1]} : vector<16x256xf32> to vector<16x128xf32>
    %cst_50 = arith.constant 9.99999997E-7 : f32
    %93 = vector.broadcast %cst_50 : f32 to vector<16x128xf32>
    %94 = arith.addf %92, %93 : vector<16x128xf32>
    %95 = tpu.reciprocal %94 {approx = true} : vector<16x128xf32> -> vector<16x128xf32>
    %96 = arith.mulf %91, %95 : vector<16x128xf32>
    %97 = arith.addf %90, %96 : vector<16x128xf32>
    %cst_51 = arith.constant 0.000000e+00 : f32
    %98 = vector.broadcast %cst_51 : f32 to vector<16x128xf32>
    %99 = arith.maximumf %97, %98 : vector<16x128xf32>
    %100 = arith.addf %56, %99 : vector<16x128xf32>
    %cst_52 = arith.constant 0.000000e+00 : f32
    %101 = vector.broadcast %cst_52 : f32 to vector<32x128xf32>
    %102 = arith.maximumf %76, %101 : vector<32x128xf32>
    %103 = arith.addf %59, %102 : vector<32x128xf32>
    %104 = arith.truncf %100 : vector<16x128xf32> to vector<16x128xbf16>
    %105 = arith.truncf %7 : vector<16x128xf32> to vector<16x128xbf16>
    %106 = tpu.concatenate %104, %105 in 1 : vector<16x128xbf16>, vector<16x128xbf16> -> vector<16x256xbf16>
    %c0_53 = arith.constant 0 : index
    %c0_54 = arith.constant 0 : index
    %107 = vector.load %arg12[%c0_53, %c0_54] : memref<256x128xbf16, #tpu.memory_space<vmem>>, vector<256x128xbf16>
    %cst_55 = arith.constant dense<0.000000e+00> : vector<16x128xf32>
    %108 = tpu.matmul %106, %107, %cst_55 {dimension_numbers = #tpu.dot_dimension_numbers<[1], [0], [0], [1], [0, 0, 1, 1], [], []>} : vector<16x256xbf16>, vector<256x128xbf16>, vector<16x128xf32> -> vector<16x128xf32>
    %c0_56 = arith.constant 0 : index
    %c0_57 = arith.constant 0 : index
    %109 = vector.load %arg15[%c0_56, %c0_57] : memref<3x128xf32, #tpu.memory_space<vmem>>, vector<1x128xf32>
    %110 = vector.broadcast %109 : vector<1x128xf32> to vector<16x128xf32>
    %111 = arith.addf %108, %110 : vector<16x128xf32>
    %cst_58 = arith.constant 0.000000e+00 : f32
    %112 = vector.broadcast %cst_58 : f32 to vector<16x128xf32>
    %113 = arith.maximumf %111, %112 : vector<16x128xf32>
    %114 = arith.truncf %113 : vector<16x128xf32> to vector<16x128xbf16>
    %c0_59 = arith.constant 0 : index
    %c0_60 = arith.constant 0 : index
    %115 = vector.load %arg13[%c0_59, %c0_60] : memref<128x128xbf16, #tpu.memory_space<vmem>>, vector<128x128xbf16>
    %cst_61 = arith.constant dense<0.000000e+00> : vector<16x128xf32>
    %116 = tpu.matmul %114, %115, %cst_61 {dimension_numbers = #tpu.dot_dimension_numbers<[1], [0], [0], [1], [0, 0, 1, 1], [], []>} : vector<16x128xbf16>, vector<128x128xbf16>, vector<16x128xf32> -> vector<16x128xf32>
    %c1_62 = arith.constant 1 : index
    %c0_63 = arith.constant 0 : index
    %117 = vector.load %arg15[%c1_62, %c0_63] : memref<3x128xf32, #tpu.memory_space<vmem>>, vector<1x128xf32>
    %118 = vector.broadcast %117 : vector<1x128xf32> to vector<16x128xf32>
    %119 = arith.addf %116, %118 : vector<16x128xf32>
    %cst_64 = arith.constant 0.000000e+00 : f32
    %120 = vector.broadcast %cst_64 : f32 to vector<16x128xf32>
    %121 = arith.maximumf %119, %120 : vector<16x128xf32>
    %122 = arith.truncf %121 : vector<16x128xf32> to vector<16x128xbf16>
    %c0_65 = arith.constant 0 : index
    %c0_66 = arith.constant 0 : index
    %123 = vector.load %arg14[%c0_65, %c0_66] : memref<128x128xbf16, #tpu.memory_space<vmem>>, vector<128x128xbf16>
    %cst_67 = arith.constant dense<0.000000e+00> : vector<16x128xf32>
    %124 = tpu.matmul %122, %123, %cst_67 {dimension_numbers = #tpu.dot_dimension_numbers<[1], [0], [0], [1], [0, 0, 1, 1], [], []>} : vector<16x128xbf16>, vector<128x128xbf16>, vector<16x128xf32> -> vector<16x128xf32>
    %c2 = arith.constant 2 : index
    %c0_68 = arith.constant 0 : index
    %125 = vector.load %arg15[%c2, %c0_68] : memref<3x128xf32, #tpu.memory_space<vmem>>, vector<1x128xf32>
    %126 = vector.broadcast %125 : vector<1x128xf32> to vector<16x128xf32>
    %127 = arith.addf %124, %126 : vector<16x128xf32>
    %c0_69 = arith.constant 0 : index
    %c0_70 = arith.constant 0 : index
    %128 = vector.load %arg20[%c0_69, %c0_70] : memref<16x128xf32, #tpu.memory_space<vmem>>, vector<16x128xf32>
    tpu.vector_store %arg20[%c0_69, %c0_70], %127 {strides = array<i32>} : memref<16x128xf32, #tpu.memory_space<vmem>>, vector<16x128xf32>,
    %129 = arith.truncf %103 : vector<32x128xf32> to vector<32x128xbf16>
    %c0_71 = arith.constant 0 : index
    %c0_72 = arith.constant 0 : index
    %130 = vector.load %arg16[%c0_71, %c0_72] : memref<128x128xbf16, #tpu.memory_space<vmem>>, vector<128x128xbf16>
    %cst_73 = arith.constant dense<0.000000e+00> : vector<32x128xf32>
    %131 = tpu.matmul %129, %130, %cst_73 {dimension_numbers = #tpu.dot_dimension_numbers<[1], [0], [0], [1], [0, 0, 1, 1], [], []>} : vector<32x128xbf16>, vector<128x128xbf16>, vector<32x128xf32> -> vector<32x128xf32>
    %c0_74 = arith.constant 0 : index
    %c0_75 = arith.constant 0 : index
    %132 = vector.load %arg19[%c0_74, %c0_75] : memref<3x128xf32, #tpu.memory_space<vmem>>, vector<1x128xf32>
    %133 = vector.broadcast %132 : vector<1x128xf32> to vector<32x128xf32>
    %134 = arith.addf %131, %133 : vector<32x128xf32>
    %cst_76 = arith.constant 0.000000e+00 : f32
    %135 = vector.broadcast %cst_76 : f32 to vector<32x128xf32>
    %136 = arith.maximumf %134, %135 : vector<32x128xf32>
    %137 = arith.truncf %136 : vector<32x128xf32> to vector<32x128xbf16>
    %c0_77 = arith.constant 0 : index
    %c0_78 = arith.constant 0 : index
    %138 = vector.load %arg17[%c0_77, %c0_78] : memref<128x128xbf16, #tpu.memory_space<vmem>>, vector<128x128xbf16>
    %cst_79 = arith.constant dense<0.000000e+00> : vector<32x128xf32>
    %139 = tpu.matmul %137, %138, %cst_79 {dimension_numbers = #tpu.dot_dimension_numbers<[1], [0], [0], [1], [0, 0, 1, 1], [], []>} : vector<32x128xbf16>, vector<128x128xbf16>, vector<32x128xf32> -> vector<32x128xf32>
    %c1_80 = arith.constant 1 : index
    %c0_81 = arith.constant 0 : index
    %140 = vector.load %arg19[%c1_80, %c0_81] : memref<3x128xf32, #tpu.memory_space<vmem>>, vector<1x128xf32>
    %141 = vector.broadcast %140 : vector<1x128xf32> to vector<32x128xf32>
    %142 = arith.addf %139, %141 : vector<32x128xf32>
    %cst_82 = arith.constant 0.000000e+00 : f32
    %143 = vector.broadcast %cst_82 : f32 to vector<32x128xf32>
    %144 = arith.maximumf %142, %143 : vector<32x128xf32>
    %145 = arith.truncf %144 : vector<32x128xf32> to vector<32x128xbf16>
    %c0_83 = arith.constant 0 : index
    %c0_84 = arith.constant 0 : index
    %146 = vector.load %arg18[%c0_83, %c0_84] : memref<128x128xbf16, #tpu.memory_space<vmem>>, vector<128x128xbf16>
    %cst_85 = arith.constant dense<0.000000e+00> : vector<32x128xf32>
    %147 = tpu.matmul %145, %146, %cst_85 {dimension_numbers = #tpu.dot_dimension_numbers<[1], [0], [0], [1], [0, 0, 1, 1], [], []>} : vector<32x128xbf16>, vector<128x128xbf16>, vector<32x128xf32> -> vector<32x128xf32>
    %c2_86 = arith.constant 2 : index
    %c0_87 = arith.constant 0 : index
    %148 = vector.load %arg19[%c2_86, %c0_87] : memref<3x128xf32, #tpu.memory_space<vmem>>, vector<1x128xf32>
    %149 = vector.broadcast %148 : vector<1x128xf32> to vector<32x128xf32>
    %150 = arith.addf %147, %149 : vector<32x128xf32>
    %c0_88 = arith.constant 0 : index
    %c0_89 = arith.constant 0 : index
    %151 = vector.load %arg21[%c0_88, %c0_89] : memref<32x128xf32, #tpu.memory_space<vmem>>, vector<32x128xf32>
    tpu.vector_store %arg21[%c0_88, %c0_89], %150 {strides = array<i32>} : memref<32x128xf32, #tpu.memory_space<vmem>>, vector<32x128xf32>,
    return
  }
}

</mosaic_0001>

<llo_original>
// kernel: gcn_net_sf_forward.1
$region0: #{gcn_net_sf_forward.1}
  #allocation0 [shape = 'u32[]', space=smem, size = 0x4, offset = 0x4, fixed_abs, tag = 'smem constant byte address 0x4 - core index']
  #allocation1 [shape = 'u32[72,128]{1,0:T(1,128)}', space=vmem, size = 0x9000, scoped, tag = 'internal scratch']
  %s0 = inlined_call_operand.vmem [shape: bf16[16,128], index: 0, kind: input, shape index: {}]
  %s1 = inlined_call_operand.vmem [shape: bf16[32,128], index: 1, kind: input, shape index: {}]
  %s2 = inlined_call_operand.vmem [shape: bf16[32,16], index: 2, kind: input, shape index: {}]
  %s3 = inlined_call_operand.vmem [shape: bf16[32,16], index: 3, kind: input, shape index: {}]
  %s4 = inlined_call_operand.vmem [shape: bf16[128,256], index: 4, kind: input, shape index: {}]
  %s5 = inlined_call_operand.vmem [shape: f32[1,256], index: 5, kind: input, shape index: {}]
  %s6 = inlined_call_operand.vmem [shape: bf16[128,128], index: 6, kind: input, shape index: {}]
  %s7 = inlined_call_operand.vmem [shape: f32[1,128], index: 7, kind: input, shape index: {}]
  %s8 = inlined_call_operand.hbm [shape: bf16[2,384,256], index: 8, kind: input, shape index: {}]
  %s9 = inlined_call_operand.hbm [shape: bf16[2,128,128], index: 9, kind: input, shape index: {}]
  %s10 = inlined_call_operand.vmem [shape: f32[2,128], index: 10, kind: input, shape index: {}]
  %s11 = inlined_call_operand.vmem [shape: f32[2,128], index: 11, kind: input, shape index: {}]
  %s12 = inlined_call_operand.hbm [shape: bf16[256,128], index: 12, kind: input, shape index: {}]
  %s13 = inlined_call_operand.hbm [shape: bf16[128,128], index: 13, kind: input, shape index: {}]
  %s14 = inlined_call_operand.hbm [shape: bf16[128,128], index: 14, kind: input, shape index: {}]
  %s15 = inlined_call_operand.vmem [shape: f32[3,128], index: 15, kind: input, shape index: {}]
  %s16 = inlined_call_operand.hbm [shape: bf16[128,128], index: 16, kind: input, shape index: {}]
  %s17 = inlined_call_operand.hbm [shape: bf16[128,128], index: 17, kind: input, shape index: {}]
  %s18 = inlined_call_operand.hbm [shape: bf16[128,128], index: 18, kind: input, shape index: {}]
  %s19 = inlined_call_operand.vmem [shape: f32[3,128], index: 19, kind: input, shape index: {}]
  %s20 = inlined_call_operand.vmem [shape: f32[16,128], index: 20, kind: output, shape index: {0}]
  %s21 = inlined_call_operand.vmem [shape: f32[32,128], index: 21, kind: output, shape index: {1}]
  %22 = xla_tuple %s20, %s21
  %s23 = sld [smem:[#allocation0]]
  $region130: #{gcn_net_sf_forward.1} parent=0
    _
  %s25 = ssub.s32 1, %s23
  %s26 = scalar_select 0, %s25, %s23
  $region1: #{gcn_net_sf_forward.1} parent=0
    #allocation2 [shape = 'u8[393216]{0}', space=vmem, size = 0x60000, scoped, tag = 'input window, operand 8, single buffered']
    #allocation3 [shape = 's32[1]{0}', space=sflag, size = 0x4, scoped, tag = 'scoped memory for gcn_net_sf_forward.1']
    #allocation4 [shape = 'u8[65536]{0}', space=vmem, size = 0x10000, scoped, tag = 'input window, operand 9, single buffered']
    #allocation5 [shape = 's32[1]{0}', space=sflag, size = 0x4, scoped, tag = 'scoped memory for gcn_net_sf_forward.1']
    #allocation6 [shape = 'u8[65536]{0}', space=vmem, size = 0x10000, scoped, tag = 'input window, operand 12, single buffered']
    #allocation7 [shape = 'u8[32768]{0}', space=vmem, size = 0x8000, scoped, tag = 'input window, operand 13, single buffered']
    #allocation8 [shape = 's32[1]{0}', space=sflag, size = 0x4, scoped, tag = 'scoped memory for gcn_net_sf_forward.1']
    #allocation9 [shape = 'u8[32768]{0}', space=vmem, size = 0x8000, scoped, tag = 'input window, operand 14, single buffered']
    #allocation10 [shape = 'u8[32768]{0}', space=vmem, size = 0x8000, scoped, tag = 'input window, operand 16, single buffered']
    #allocation11 [shape = 's32[1]{0}', space=sflag, size = 0x4, scoped, tag = 'scoped memory for gcn_net_sf_forward.1']
    #allocation12 [shape = 'u8[32768]{0}', space=vmem, size = 0x8000, scoped, tag = 'input window, operand 17, single buffered']
    #allocation13 [shape = 'u8[32768]{0}', space=vmem, size = 0x8000, scoped, tag = 'input window, operand 18, single buffered']
    #allocation14 [shape = 's32[1]{0}', space=sflag, size = 0x4, scoped, tag = 'scoped memory for gcn_net_sf_forward.1']
    %27 = vsyncpa [#allocation3], 0
    %28 = vsyncpa [#allocation5], 0
    %29 = vsyncpa [#allocation8], 0
    %30 = vsyncpa [#allocation11], 0
    %31 = vsyncpa [#allocation14], 0
    // Predicated region
    $region2: #{gcn_net_sf_forward.1} parent=1 // pred_check
      _
    $region3: #{gcn_net_sf_forward.1} parent=1 // pred_check_branch
      %33 = sbr.rel (0) target = $region5
    $region4: #{gcn_net_sf_forward.1} parent=1 // pred_region
      _
    $region5: #{gcn_net_sf_forward.1} parent=1 // pred_fallthru
      _
    // Predicated region
    $region6: #{gcn_net_sf_forward.1} parent=1 // pred_check
      _
    $region7: #{gcn_net_sf_forward.1} parent=1 // pred_check_branch
      %35 = sbr.rel (0) target = $region9
    $region8: #{gcn_net_sf_forward.1} parent=1 // pred_region
      _
    $region9: #{gcn_net_sf_forward.1} parent=1 // pred_fallthru
      _
    // Predicated region
    $region10: #{gcn_net_sf_forward.1} parent=1 // pred_check
      _
    $region11: #{gcn_net_sf_forward.1} parent=1 // pred_check_branch
      %37 = sbr.rel (0) target = $region13
    $region12: #{gcn_net_sf_forward.1} parent=1 // pred_region
      _
    $region13: #{gcn_net_sf_forward.1} parent=1 // pred_fallthru
      _
    // Predicated region
    $region14: #{gcn_net_sf_forward.1} parent=1 // pred_check
      _
    $region15: #{gcn_net_sf_forward.1} parent=1 // pred_check_branch
      %39 = sbr.rel (0) target = $region17
    $region16: #{gcn_net_sf_forward.1} parent=1 // pred_region
      _
    $region17: #{gcn_net_sf_forward.1} parent=1 // pred_fallthru
      _
    // Predicated region
    $region18: #{gcn_net_sf_forward.1} parent=1 // pred_check
      _
    $region19: #{gcn_net_sf_forward.1} parent=1 // pred_check_branch
      %41 = sbr.rel (0) target = $region21
    $region20: #{gcn_net_sf_forward.1} parent=1 // pred_region
      _
    $region21: #{gcn_net_sf_forward.1} parent=1 // pred_fallthru
      _
    // Predicated region
    $region22: #{gcn_net_sf_forward.1} parent=1 // pred_check
      _
    $region23: #{gcn_net_sf_forward.1} parent=1 // pred_check_branch
      %43 = sbr.rel (0) target = $region25
    $region24: #{gcn_net_sf_forward.1} parent=1 // pred_region
      _
    $region25: #{gcn_net_sf_forward.1} parent=1 // pred_fallthru
      _
    // Predicated region
    $region26: #{gcn_net_sf_forward.1} parent=1 // pred_check
      _
    $region27: #{gcn_net_sf_forward.1} parent=1 // pred_check_branch
      %45 = sbr.rel (0) target = $region29
    $region28: #{gcn_net_sf_forward.1} parent=1 // pred_region
      _
    $region29: #{gcn_net_sf_forward.1} parent=1 // pred_fallthru
      _
    // Predicated region
    $region30: #{gcn_net_sf_forward.1} parent=1 // pred_check
      _
    $region31: #{gcn_net_sf_forward.1} parent=1 // pred_check_branch
      %47 = sbr.rel (0) target = $region33
    $region32: #{gcn_net_sf_forward.1} parent=1 // pred_region
      _
    $region33: #{gcn_net_sf_forward.1} parent=1 // pred_fallthru
      _
    // Predicated region
    $region34: #{gcn_net_sf_forward.1} parent=1 // pred_check
      _
    $region35: #{gcn_net_sf_forward.1} parent=1 // pred_check_branch
      %49 = sbr.rel (0) target = $region37
    $region36: #{gcn_net_sf_forward.1} parent=1 // pred_region
      %51 = vsyncadd [#allocation3], 0
      %s52 = sshll.u32 %s8, 4
      %s53 = int_to_ptr.hbm [resolvable:$true] %s52
      %s54 = sshll.u32 [#allocation2], 4
      %s55 = int_to_ptr.vmem [resolvable:$true] %s54
      %60 = dma.hbm_to_vmem [thread:$0]  %s53, 12288, %s55, [#allocation3], 128, 128, 8
    $region37: #{gcn_net_sf_forward.1} parent=1 // pred_fallthru
      _
    // Predicated region
    $region38: #{gcn_net_sf_forward.1} parent=1 // pred_check
      _
    $region39: #{gcn_net_sf_forward.1} parent=1 // pred_check_branch
      %62 = sbr.rel (0) target = $region41
    $region40: #{gcn_net_sf_forward.1} parent=1 // pred_region
      %64 = vsyncadd [#allocation5], 0
      %s65 = sshll.u32 %s9, 4
      %s66 = int_to_ptr.hbm [resolvable:$true] %s65
      %s67 = sshll.u32 [#allocation4], 4
      %s68 = int_to_ptr.vmem [resolvable:$true] %s67
      %73 = dma.hbm_to_vmem [thread:$0]  %s66, 2048, %s68, [#allocation5], 64, 64, 4
    $region41: #{gcn_net_sf_forward.1} parent=1 // pred_fallthru
      _
    // Predicated region
    $region42: #{gcn_net_sf_forward.1} parent=1 // pred_check
      _
    $region43: #{gcn_net_sf_forward.1} parent=1 // pred_check_branch
      %75 = sbr.rel (0) target = $region45
    $region44: #{gcn_net_sf_forward.1} parent=1 // pred_region
      _
    $region45: #{gcn_net_sf_forward.1} parent=1 // pred_fallthru
      _
    // Predicated region
    $region46: #{gcn_net_sf_forward.1} parent=1 // pred_check
      _
    $region47: #{gcn_net_sf_forward.1} parent=1 // pred_check_branch
      %77 = sbr.rel (0) target = $region49
    $region48: #{gcn_net_sf_forward.1} parent=1 // pred_region
      _
    $region49: #{gcn_net_sf_forward.1} parent=1 // pred_fallthru
      _
    // Predicated region
    $region50: #{gcn_net_sf_forward.1} parent=1 // pred_check
      _
    $region51: #{gcn_net_sf_forward.1} parent=1 // pred_check_branch
      %79 = sbr.rel (0) target = $region53
    $region52: #{gcn_net_sf_forward.1} parent=1 // pred_region
      %81 = vsyncadd [#allocation5], 0
      %s82 = sshll.u32 %s12, 4
      %s83 = int_to_ptr.hbm [resolvable:$true] %s82
      %s84 = sshll.u32 [#allocation6], 4
      %s85 = int_to_ptr.vmem [resolvable:$true] %s84
      %90 = dma.hbm_to_vmem [thread:$0]  %s83, 2048, %s85, [#allocation5], 64, 64, 4
    $region53: #{gcn_net_sf_forward.1} parent=1 // pred_fallthru
      _
    // Predicated region
    $region54: #{gcn_net_sf_forward.1} parent=1 // pred_check
      _
    $region55: #{gcn_net_sf_forward.1} parent=1 // pred_check_branch
      %92 = sbr.rel (0) target = $region57
    $region56: #{gcn_net_sf_forward.1} parent=1 // pred_region
      %94 = vsyncadd [#allocation8], 0
      %s95 = sshll.u32 %s13, 4
      %s96 = int_to_ptr.hbm [resolvable:$true] %s95
      %s97 = sshll.u32 [#allocation7], 4
      %s98 = int_to_ptr.vmem [resolvable:$true] %s97
      %103 = dma.hbm_to_vmem [thread:$0]  %s96, 1024, %s98, [#allocation8], 64, 64, 4
    $region57: #{gcn_net_sf_forward.1} parent=1 // pred_fallthru
      _
    // Predicated region
    $region58: #{gcn_net_sf_forward.1} parent=1 // pred_check
      _
    $region59: #{gcn_net_sf_forward.1} parent=1 // pred_check_branch
      %105 = sbr.rel (0) target = $region61
    $region60: #{gcn_net_sf_forward.1} parent=1 // pred_region
      %107 = vsyncadd [#allocation8], 0
      %s108 = sshll.u32 %s14, 4
      %s109 = int_to_ptr.hbm [resolvable:$true] %s108
      %s110 = sshll.u32 [#allocation9], 4
      %s111 = int_to_ptr.vmem [resolvable:$true] %s110
      %116 = dma.hbm_to_vmem [thread:$0]  %s109, 1024, %s111, [#allocation8], 64, 64, 4
    $region61: #{gcn_net_sf_forward.1} parent=1 // pred_fallthru
      _
    // Predicated region
    $region62: #{gcn_net_sf_forward.1} parent=1 // pred_check
      _
    $region63: #{gcn_net_sf_forward.1} parent=1 // pred_check_branch
      %118 = sbr.rel (0) target = $region65
    $region64: #{gcn_net_sf_forward.1} parent=1 // pred_region
      _
    $region65: #{gcn_net_sf_forward.1} parent=1 // pred_fallthru
      _
    // Predicated region
    $region66: #{gcn_net_sf_forward.1} parent=1 // pred_check
      _
    $region67: #{gcn_net_sf_forward.1} parent=1 // pred_check_branch
      %120 = sbr.rel (0) target = $region69
    $region68: #{gcn_net_sf_forward.1} parent=1 // pred_region
      %122 = vsyncadd [#allocation11], 0
      %s123 = sshll.u32 %s16, 4
      %s124 = int_to_ptr.hbm [resolvable:$true] %s123
      %s125 = sshll.u32 [#allocation10], 4
      %s126 = int_to_ptr.vmem [resolvable:$true] %s125
      %131 = dma.hbm_to_vmem [thread:$0]  %s124, 1024, %s126, [#allocation11], 64, 64, 4
    $region69: #{gcn_net_sf_forward.1} parent=1 // pred_fallthru
      _
    // Predicated region
    $region70: #{gcn_net_sf_forward.1} parent=1 // pred_check
      _
    $region71: #{gcn_net_sf_forward.1} parent=1 // pred_check_branch
      %133 = sbr.rel (0) target = $region73
    $region72: #{gcn_net_sf_forward.1} parent=1 // pred_region
      %135 = vsyncadd [#allocation11], 0
      %s136 = sshll.u32 %s17, 4
      %s137 = int_to_ptr.hbm [resolvable:$true] %s136
      %s138 = sshll.u32 [#allocation12], 4
      %s139 = int_to_ptr.vmem [resolvable:$true] %s138
      %144 = dma.hbm_to_vmem [thread:$0]  %s137, 1024, %s139, [#allocation11], 64, 64, 4
    $region73: #{gcn_net_sf_forward.1} parent=1 // pred_fallthru
      _
    // Predicated region
    $region74: #{gcn_net_sf_forward.1} parent=1 // pred_check
      _
    $region75: #{gcn_net_sf_forward.1} parent=1 // pred_check_branch
      %146 = sbr.rel (0) target = $region77
    $region76: #{gcn_net_sf_forward.1} parent=1 // pred_region
      %148 = vsyncadd [#allocation14], 0
      %s149 = sshll.u32 %s18, 4
      %s150 = int_to_ptr.hbm [resolvable:$true] %s149
      %s151 = sshll.u32 [#allocation13], 4
      %s152 = int_to_ptr.vmem [resolvable:$true] %s151
      %157 = dma.hbm_to_vmem [thread:$0]  %s150, 1024, %s152, [#allocation14], 64, 64, 4
    $region77: #{gcn_net_sf_forward.1} parent=1 // pred_fallthru
      _
    // Predicated region
    $region78: #{gcn_net_sf_forward.1} parent=1 // pred_check
      _
    $region79: #{gcn_net_sf_forward.1} parent=1 // pred_check_branch
      %159 = sbr.rel (0) target = $region81
    $region80: #{gcn_net_sf_forward.1} parent=1 // pred_region
      _
    $region81: #{gcn_net_sf_forward.1} parent=1 // pred_fallthru
      _
    // Predicated region
    $region82: #{gcn_net_sf_forward.1} parent=1 // pred_check
      _
    $region83: #{gcn_net_sf_forward.1} parent=1 // pred_check_branch
      %161 = sbr.rel (0) target = $region85
    $region84: #{gcn_net_sf_forward.1} parent=1 // pred_region
      %163 = dma.done [#allocation3], 12288
    $region85: #{gcn_net_sf_forward.1} parent=1 // pred_fallthru
      _
    // Predicated region
    $region86: #{gcn_net_sf_forward.1} parent=1 // pred_check
      _
    $region87: #{gcn_net_sf_forward.1} parent=1 // pred_check_branch
      %165 = sbr.rel (0) target = $region89
    $region88: #{gcn_net_sf_forward.1} parent=1 // pred_region
      %167 = dma.done [#allocation5], 2048
    $region89: #{gcn_net_sf_forward.1} parent=1 // pred_fallthru
      _
    // Predicated region
    $region90: #{gcn_net_sf_forward.1} parent=1 // pred_check
      _
    $region91: #{gcn_net_sf_forward.1} parent=1 // pred_check_branch
      %169 = sbr.rel (0) target = $region93
    $region92: #{gcn_net_sf_forward.1} parent=1 // pred_region
      %171 = dma.done [#allocation5], 2048
    $region93: #{gcn_net_sf_forward.1} parent=1 // pred_fallthru
      _
    // Predicated region
    $region94: #{gcn_net_sf_forward.1} parent=1 // pred_check
      _
    $region95: #{gcn_net_sf_forward.1} parent=1 // pred_check_branch
      %173 = sbr.rel (0) target = $region97
    $region96: #{gcn_net_sf_forward.1} parent=1 // pred_region
      %175 = dma.done [#allocation8], 1024
    $region97: #{gcn_net_sf_forward.1} parent=1 // pred_fallthru
      _
    // Predicated region
    $region98: #{gcn_net_sf_forward.1} parent=1 // pred_check
      _
    $region99: #{gcn_net_sf_forward.1} parent=1 // pred_check_branch
      %177 = sbr.rel (0) target = $region101
    $region100: #{gcn_net_sf_forward.1} parent=1 // pred_region
      %179 = dma.done [#allocation8], 1024
    $region101: #{gcn_net_sf_forward.1} parent=1 // pred_fallthru
      _
    // Predicated region
    $region102: #{gcn_net_sf_forward.1} parent=1 // pred_check
      _
    $region103: #{gcn_net_sf_forward.1} parent=1 // pred_check_branch
      %181 = sbr.rel (0) target = $region105
    $region104: #{gcn_net_sf_forward.1} parent=1 // pred_region
      %183 = dma.done [#allocation11], 1024
    $region105: #{gcn_net_sf_forward.1} parent=1 // pred_fallthru
      _
    // Predicated region
    $region106: #{gcn_net_sf_forward.1} parent=1 // pred_check
      _
    $region107: #{gcn_net_sf_forward.1} parent=1 // pred_check_branch
      %185 = sbr.rel (0) target = $region109
    $region108: #{gcn_net_sf_forward.1} parent=1 // pred_region
      %187 = dma.done [#allocation11], 1024
    $region109: #{gcn_net_sf_forward.1} parent=1 // pred_fallthru
      _
    // Predicated region
    $region110: #{gcn_net_sf_forward.1} parent=1 // pred_check
      _
    $region111: #{gcn_net_sf_forward.1} parent=1 // pred_check_branch
      %189 = sbr.rel (0) target = $region113
    $region112: #{gcn_net_sf_forward.1} parent=1 // pred_region
      %191 = dma.done [#allocation14], 1024
    $region113: #{gcn_net_sf_forward.1} parent=1 // pred_fallthru
      _
    %v193 = vld [vmem:[%s0] sm:$0xf]
    %v194 = vld [vmem:[%s0 + $0x4] sm:$0xf]
    %v195 = vld [vmem:[%s4] sm:$0xff]
    %v196 = vld [vmem:[%s4 + $0x8] sm:$0xff]
    %v197 = vld [vmem:[%s4 + $0x10] sm:$0xff]
    %v198 = vld [vmem:[%s4 + $0x18] sm:$0xff]
    %v199 = vld [vmem:[%s4 + $0x20] sm:$0xff]
    %v200 = vld [vmem:[%s4 + $0x28] sm:$0xff]
    %v201 = vld [vmem:[%s4 + $0x30] sm:$0xff]
    %v202 = vld [vmem:[%s4 + $0x38] sm:$0xff]
    %v203 = vld [vmem:[%s4 + $0x40] sm:$0xff]
    %v204 = vld [vmem:[%s4 + $0x48] sm:$0xff]
    %v205 = vld [vmem:[%s4 + $0x50] sm:$0xff]
    %v206 = vld [vmem:[%s4 + $0x58] sm:$0xff]
    %v207 = vld [vmem:[%s4 + $0x60] sm:$0xff]
    %v208 = vld [vmem:[%s4 + $0x68] sm:$0xff]
    %v209 = vld [vmem:[%s4 + $0x70] sm:$0xff]
    %v210 = vld [vmem:[%s4 + $0x78] sm:$0xff]
    %v211 = vld [vmem:[%s5] sm:$0x3]
    %v213 = vperm.slane %v211, 0
    %v214 = vperm.slane %v211, 1
    %v219 = vunpack.c.l.b16 %v193
    %v220 = vunpack.c.l.b16 %v194
    %v221 = vpack.c.b16 %v220, %v219
    %v239 = vunpack.c.l.b16 %v195
    %v240 = vunpack.c.h.b16 %v195
    %v241 = vunpack.c.l.b16 %v196
    %v242 = vunpack.c.h.b16 %v196
    %v243 = vunpack.c.l.b16 %v197
    %v244 = vunpack.c.h.b16 %v197
    %v245 = vunpack.c.l.b16 %v198
    %v246 = vunpack.c.h.b16 %v198
    %v247 = vunpack.c.l.b16 %v199
    %v248 = vunpack.c.h.b16 %v199
    %v249 = vunpack.c.l.b16 %v200
    %v250 = vunpack.c.h.b16 %v200
    %v251 = vunpack.c.l.b16 %v201
    %v252 = vunpack.c.h.b16 %v201
    %v253 = vunpack.c.l.b16 %v202
    %v254 = vunpack.c.h.b16 %v202
    %v255 = vunpack.c.l.b16 %v203
    %v256 = vunpack.c.h.b16 %v203
    %v257 = vunpack.c.l.b16 %v204
    %v258 = vunpack.c.h.b16 %v204
    %v259 = vunpack.c.l.b16 %v205
    %v260 = vunpack.c.h.b16 %v205
    %v261 = vunpack.c.l.b16 %v206
    %v262 = vunpack.c.h.b16 %v206
    %v263 = vunpack.c.l.b16 %v207
    %v264 = vunpack.c.h.b16 %v207
    %v265 = vunpack.c.l.b16 %v208
    %v266 = vunpack.c.h.b16 %v208
    %v267 = vunpack.c.l.b16 %v209
    %v268 = vunpack.c.h.b16 %v209
    %v269 = vunpack.c.l.b16 %v210
    %v270 = vunpack.c.h.b16 %v210
    %v271 = vpack.c.b16 %v241, %v239
    %v272 = vpack.c.b16 %v242, %v240
    %v273 = vpack.c.b16 %v245, %v243
    %v274 = vpack.c.b16 %v246, %v244
    %v275 = vpack.c.b16 %v249, %v247
    %v276 = vpack.c.b16 %v250, %v248
    %v277 = vpack.c.b16 %v253, %v251
    %v278 = vpack.c.b16 %v254, %v252
    %v279 = vpack.c.b16 %v257, %v255
    %v280 = vpack.c.b16 %v258, %v256
    %v281 = vpack.c.b16 %v261, %v259
    %v282 = vpack.c.b16 %v262, %v260
    %v283 = vpack.c.b16 %v265, %v263
    %v284 = vpack.c.b16 %v266, %v264
    %v285 = vpack.c.b16 %v269, %v267
    %v286 = vpack.c.b16 %v270, %v268
    %303 = vmatpush.bf16.msra.mxu0 %v285
    %304 = vmatpush.bf16.msra.mxu0 %v283
    %305 = vmatpush.bf16.msra.mxu0 %v281
    %306 = vmatpush.bf16.msra.mxu0 %v279
    %307 = vmatpush.bf16.msra.mxu0 %v277
    %308 = vmatpush.bf16.msra.mxu0 %v275
    %309 = vmatpush.bf16.msra.mxu0 %v273
    %310 = vmatpush.bf16.msra.mxu0 %v271
    %311 = vmatmul.bf16.gmra.mxu0 %v221
    %v312 = vpop.f32.mrf.mxu0
    %v313 = vadd.f32 %v213, %v312
    %v314 = vpop.f32.mrf.mxu0
    %v315 = vadd.f32 %v213, %v314
    %316 = vdwg.mxu0
    %317 = vmatpush.bf16.msra.mxu0 %v286
    %318 = vmatpush.bf16.msra.mxu0 %v284
    %319 = vmatpush.bf16.msra.mxu0 %v282
    %320 = vmatpush.bf16.msra.mxu0 %v280
    %321 = vmatpush.bf16.msra.mxu0 %v278
    %322 = vmatpush.bf16.msra.mxu0 %v276
    %323 = vmatpush.bf16.msra.mxu0 %v274
    %324 = vmatpush.bf16.msra.mxu0 %v272
    %325 = vmatmul.bf16.gmra.mxu0 %v221
    %v326 = vpop.f32.mrf.mxu0
    %v327 = vadd.f32 %v214, %v326
    %v328 = vpop.f32.mrf.mxu0
    %v329 = vadd.f32 %v214, %v328
    %330 = vdwg.mxu0
    %v331 = vld [vmem:[%s1] sm:$0xf]
    %v332 = vld [vmem:[%s1 + $0x4] sm:$0xf]
    %v333 = vld [vmem:[%s1 + $0x8] sm:$0xf]
    %v334 = vld [vmem:[%s1 + $0xc] sm:$0xf]
    %v335 = vld [vmem:[%s6] sm:$0xf]
    %v336 = vld [vmem:[%s6 + $0x4] sm:$0xf]
    %v337 = vld [vmem:[%s6 + $0x8] sm:$0xf]
    %v338 = vld [vmem:[%s6 + $0xc] sm:$0xf]
    %v339 = vld [vmem:[%s6 + $0x10] sm:$0xf]
    %v340 = vld [vmem:[%s6 + $0x14] sm:$0xf]
    %v341 = vld [vmem:[%s6 + $0x18] sm:$0xf]
    %v342 = vld [vmem:[%s6 + $0x1c] sm:$0xf]
    %v343 = vld [vmem:[%s6 + $0x20] sm:$0xf]
    %v344 = vld [vmem:[%s6 + $0x24] sm:$0xf]
    %v345 = vld [vmem:[%s6 + $0x28] sm:$0xf]
    %v346 = vld [vmem:[%s6 + $0x2c] sm:$0xf]
    %v347 = vld [vmem:[%s6 + $0x30] sm:$0xf]
    %v348 = vld [vmem:[%s6 + $0x34] sm:$0xf]
    %v349 = vld [vmem:[%s6 + $0x38] sm:$0xf]
    %v350 = vld [vmem:[%s6 + $0x3c] sm:$0xf]
    %v351 = vld [vmem:[%s7] sm:$0x1]
    %v353 = vperm.slane %v351, 0
    %v359 = vunpack.c.l.b16 %v331
    %v360 = vunpack.c.l.b16 %v332
    %v361 = vunpack.c.l.b16 %v333
    %v362 = vunpack.c.l.b16 %v334
    %v363 = vpack.c.b16 %v360, %v359
    %v364 = vpack.c.b16 %v362, %v361
    %v383 = vunpack.c.l.b16 %v335
    %v384 = vunpack.c.l.b16 %v336
    %v385 = vunpack.c.l.b16 %v337
    %v386 = vunpack.c.l.b16 %v338
    %v387 = vunpack.c.l.b16 %v339
    %v388 = vunpack.c.l.b16 %v340
    %v389 = vunpack.c.l.b16 %v341
    %v390 = vunpack.c.l.b16 %v342
    %v391 = vunpack.c.l.b16 %v343
    %v392 = vunpack.c.l.b16 %v344
    %v393 = vunpack.c.l.b16 %v345
    %v394 = vunpack.c.l.b16 %v346
    %v395 = vunpack.c.l.b16 %v347
    %v396 = vunpack.c.l.b16 %v348
    %v397 = vunpack.c.l.b16 %v349
    %v398 = vunpack.c.l.b16 %v350
    %v399 = vpack.c.b16 %v384, %v383
    %v400 = vpack.c.b16 %v386, %v385
    %v401 = vpack.c.b16 %v388, %v387
    %v402 = vpack.c.b16 %v390, %v389
    %v403 = vpack.c.b16 %v392, %v391
    %v404 = vpack.c.b16 %v394, %v393
    %v405 = vpack.c.b16 %v396, %v395
    %v406 = vpack.c.b16 %v398, %v397
    %415 = vmatpush.bf16.msra.mxu0 %v406
    %416 = vmatpush.bf16.msra.mxu0 %v405
    %417 = vmatpush.bf16.msra.mxu0 %v404
    %418 = vmatpush.bf16.msra.mxu0 %v403
    %419 = vmatpush.bf16.msra.mxu0 %v402
    %420 = vmatpush.bf16.msra.mxu0 %v401
    %421 = vmatpush.bf16.msra.mxu0 %v400
    %422 = vmatpush.bf16.msra.mxu0 %v399
    %423 = vmatmul.bf16.gmra.mxu0 %v363
    %v424 = vpop.f32.mrf.mxu0
    %v425 = vadd.f32 %v353, %v424
    %v426 = vpop.f32.mrf.mxu0
    %v427 = vadd.f32 %v353, %v426
    %428 = vmatmul.bf16.gmra.mxu0 %v364
    %v429 = vpop.f32.mrf.mxu0
    %v430 = vadd.f32 %v353, %v429
    %v431 = vpop.f32.mrf.mxu0
    %v432 = vadd.f32 %v353, %v431
    %433 = vdwg.mxu0
    %v434 = vld [vmem:[%s2] sm:$0xf]
    %v435 = vld [vmem:[%s2 + $0x4] sm:$0xf]
    %v436 = vld [vmem:[%s2 + $0x8] sm:$0xf]
    %v437 = vld [vmem:[%s2 + $0xc] sm:$0xf]
    %v438 = vld [vmem:[%s3] sm:$0xf]
    %v439 = vld [vmem:[%s3 + $0x4] sm:$0xf]
    %v440 = vld [vmem:[%s3 + $0x8] sm:$0xf]
    %v441 = vld [vmem:[%s3 + $0xc] sm:$0xf]
    %v442 = vld [vmem:[#allocation2] sm:$0xff]
    %v443 = vld [vmem:[#allocation2 + $0x8] sm:$0xff]
    %v444 = vld [vmem:[#allocation2 + $0x10] sm:$0xff]
    %v445 = vld [vmem:[#allocation2 + $0x18] sm:$0xff]
    %v446 = vld [vmem:[#allocation2 + $0x20] sm:$0xff]
    %v447 = vld [vmem:[#allocation2 + $0x28] sm:$0xff]
    %v448 = vld [vmem:[#allocation2 + $0x30] sm:$0xff]
    %v449 = vld [vmem:[#allocation2 + $0x38] sm:$0xff]
    %v450 = vld [vmem:[#allocation2 + $0x40] sm:$0xff]
    %v451 = vld [vmem:[#allocation2 + $0x48] sm:$0xff]
    %v452 = vld [vmem:[#allocation2 + $0x50] sm:$0xff]
    %v453 = vld [vmem:[#allocation2 + $0x58] sm:$0xff]
    %v454 = vld [vmem:[#allocation2 + $0x60] sm:$0xff]
    %v455 = vld [vmem:[#allocation2 + $0x68] sm:$0xff]
    %v456 = vld [vmem:[#allocation2 + $0x70] sm:$0xff]
    %v457 = vld [vmem:[#allocation2 + $0x78] sm:$0xff]
    %v458 = vld [vmem:[#allocation2 + $0x80] sm:$0xff]
    %v459 = vld [vmem:[#allocation2 + $0x88] sm:$0xff]
    %v460 = vld [vmem:[#allocation2 + $0x90] sm:$0xff]
    %v461 = vld [vmem:[#allocation2 + $0x98] sm:$0xff]
    %v462 = vld [vmem:[#allocation2 + $0xa0] sm:$0xff]
    %v463 = vld [vmem:[#allocation2 + $0xa8] sm:$0xff]
    %v464 = vld [vmem:[#allocation2 + $0xb0] sm:$0xff]
    %v465 = vld [vmem:[#allocation2 + $0xb8] sm:$0xff]
    %v466 = vld [vmem:[#allocation2 + $0xc0] sm:$0xff]
    %v467 = vld [vmem:[#allocation2 + $0xc8] sm:$0xff]
    %v468 = vld [vmem:[#allocation2 + $0xd0] sm:$0xff]
    %v469 = vld [vmem:[#allocation2 + $0xd8] sm:$0xff]
    %v470 = vld [vmem:[#allocation2 + $0xe0] sm:$0xff]
    %v471 = vld [vmem:[#allocation2 + $0xe8] sm:$0xff]
    %v472 = vld [vmem:[#allocation2 + $0xf0] sm:$0xff]
    %v473 = vld [vmem:[#allocation2 + $0xf8] sm:$0xff]
    %v474 = vld [vmem:[#allocation2 + $0x100] sm:$0xff]
    %v475 = vld [vmem:[#allocation2 + $0x108] sm:$0xff]
    %v476 = vld [vmem:[#allocation2 + $0x110] sm:$0xff]
    %v477 = vld [vmem:[#allocation2 + $0x118] sm:$0xff]
    %v478 = vld [vmem:[#allocation2 + $0x120] sm:$0xff]
    %v479 = vld [vmem:[#allocation2 + $0x128] sm:$0xff]
    %v480 = vld [vmem:[#allocation2 + $0x130] sm:$0xff]
    %v481 = vld [vmem:[#allocation2 + $0x138] sm:$0xff]
    %v482 = vld [vmem:[#allocation2 + $0x140] sm:$0xff]
    %v483 = vld [vmem:[#allocation2 + $0x148] sm:$0xff]
    %v484 = vld [vmem:[#allocation2 + $0x150] sm:$0xff]
    %v485 = vld [vmem:[#allocation2 + $0x158] sm:$0xff]
    %v486 = vld [vmem:[#allocation2 + $0x160] sm:$0xff]
    %v487 = vld [vmem:[#allocation2 + $0x168] sm:$0xff]
    %v488 = vld [vmem:[#allocation2 + $0x170] sm:$0xff]
    %v489 = vld [vmem:[#allocation2 + $0x178] sm:$0xff]
    %v490 = vld [vmem:[#allocation4] sm:$0xf]
    %v491 = vld [vmem:[#allocation4 + $0x4] sm:$0xf]
    %v492 = vld [vmem:[#allocation4 + $0x8] sm:$0xf]
    %v493 = vld [vmem:[#allocation4 + $0xc] sm:$0xf]
    %v494 = vld [vmem:[#allocation4 + $0x10] sm:$0xf]
    %v495 = vld [vmem:[#allocation4 + $0x14] sm:$0xf]
    %v496 = vld [vmem:[#allocation4 + $0x18] sm:$0xf]
    %v497 = vld [vmem:[#allocation4 + $0x1c] sm:$0xf]
    %v498 = vld [vmem:[#allocation4 + $0x20] sm:$0xf]
    %v499 = vld [vmem:[#allocation4 + $0x24] sm:$0xf]
    %v500 = vld [vmem:[#allocation4 + $0x28] sm:$0xf]
    %v501 = vld [vmem:[#allocation4 + $0x2c] sm:$0xf]
    %v502 = vld [vmem:[#allocation4 + $0x30] sm:$0xf]
    %v503 = vld [vmem:[#allocation4 + $0x34] sm:$0xf]
    %v504 = vld [vmem:[#allocation4 + $0x38] sm:$0xf]
    %v505 = vld [vmem:[#allocation4 + $0x3c] sm:$0xf]
    %v506 = vld [vmem:[%s10] sm:$0x1]
    %v507 = vld [vmem:[%s11] sm:$0x1]
    %v508 = vpack.c.bf16 %v315, %v313
    %v513 = vunpack.c.l.b16 %v434
    %v514 = vunpack.c.l.b16 %v435
    %v515 = vunpack.c.l.b16 %v436
    %v516 = vunpack.c.l.b16 %v437
    %v517 = vpack.c.b16 %v514, %v513
    %v518 = vpack.c.b16 %v516, %v515
    %vm519 = vcmask 130048
    %v521 = vsel %vm519, %v517, 0
    %v524 = vsel %vm519, %v518, 0
    %526 = vmatpush.bf16.msra.mxu0 0
    %527 = vmatpush.bf16.msra.mxu0 0
    %528 = vmatpush.bf16.msra.mxu0 0
    %529 = vmatpush.bf16.msra.mxu0 0
    %530 = vmatpush.bf16.msra.mxu0 0
    %531 = vmatpush.bf16.msra.mxu0 0
    %532 = vmatpush.bf16.msra.mxu0 0
    %533 = vmatpush.bf16.msra.mxu0 %v508
    %534 = vmatmul.bf16.gmra.mxu0 %v521
    %v535 = vpop.f32.mrf.mxu0
    %v536 = vadd.f32 0.0, %v535
    %v537 = vpop.f32.mrf.mxu0
    %v538 = vadd.f32 0.0, %v537
    %539 = vmatmul.bf16.gmra.mxu0 %v524
    %v540 = vpop.f32.mrf.mxu0
    %v541 = vadd.f32 0.0, %v540
    %v542 = vpop.f32.mrf.mxu0
    %v543 = vadd.f32 0.0, %v542
    %544 = vdwg.mxu0
    %v549 = vunpack.c.l.b16 %v438
    %v550 = vunpack.c.l.b16 %v439
    %v551 = vunpack.c.l.b16 %v440
    %v552 = vunpack.c.l.b16 %v441
    %v553 = vpack.c.b16 %v550, %v549
    %v554 = vpack.c.b16 %v552, %v551
    %v556 = vsel %vm519, %v553, 0
    %v559 = vsel %vm519, %v554, 0
    %561 = vmatpush.bf16.msra.mxu0 0
    %562 = vmatpush.bf16.msra.mxu0 0
    %563 = vmatpush.bf16.msra.mxu0 0
    %564 = vmatpush.bf16.msra.mxu0 0
    %565 = vmatpush.bf16.msra.mxu0 0
    %566 = vmatpush.bf16.msra.mxu0 0
    %567 = vmatpush.bf16.msra.mxu0 0
    %568 = vmatpush.bf16.msra.mxu0 %v508
    %569 = vmatmul.bf16.gmra.mxu0 %v556
    %v570 = vpop.f32.mrf.mxu0
    %v571 = vadd.f32 0.0, %v570
    %v572 = vpop.f32.mrf.mxu0
    %v573 = vadd.f32 0.0, %v572
    %574 = vmatmul.bf16.gmra.mxu0 %v559
    %v575 = vpop.f32.mrf.mxu0
    %v576 = vadd.f32 0.0, %v575
    %v577 = vpop.f32.mrf.mxu0
    %v578 = vadd.f32 0.0, %v577
    %579 = vdwg.mxu0
    %v580 = vpack.c.bf16 %v571, %v571
    %v581 = vpack.c.bf16 %v573, %v573
    %v582 = vpack.c.bf16 %v576, %v576
    %v583 = vpack.c.bf16 %v578, %v578
    %v584 = vpack.c.bf16 %v536, %v536
    %v585 = vpack.c.bf16 %v538, %v538
    %v586 = vpack.c.bf16 %v541, %v541
    %v587 = vpack.c.bf16 %v543, %v543
    %v588 = vpack.c.bf16 %v425, %v425
    %v589 = vpack.c.bf16 %v427, %v427
    %v590 = vpack.c.bf16 %v430, %v430
    %v591 = vpack.c.bf16 %v432, %v432
    %v596 = vunpack.c.l.b16 %v580
    %v597 = vunpack.c.l.b16 %v581
    %v598 = vunpack.c.l.b16 %v582
    %v599 = vunpack.c.l.b16 %v583
    %v600 = vpack.c.b16 %v597, %v596
    %v601 = vpack.c.b16 %v599, %v598
    %v608 = vunpack.c.l.b16 %v584
    %v609 = vunpack.c.l.b16 %v585
    %v610 = vunpack.c.l.b16 %v586
    %v611 = vunpack.c.l.b16 %v587
    %v612 = vpack.c.b16 %v609, %v608
    %v613 = vpack.c.b16 %v611, %v610
    %v620 = vunpack.c.l.b16 %v588
    %v621 = vunpack.c.l.b16 %v589
    %v622 = vunpack.c.l.b16 %v590
    %v623 = vunpack.c.l.b16 %v591
    %v624 = vpack.c.b16 %v621, %v620
    %v625 = vpack.c.b16 %v623, %v622
    %v676 = vunpack.c.l.b16 %v442
    %v677 = vunpack.c.h.b16 %v442
    %v678 = vunpack.c.l.b16 %v443
    %v679 = vunpack.c.h.b16 %v443
    %v680 = vunpack.c.l.b16 %v444
    %v681 = vunpack.c.h.b16 %v444
    %v682 = vunpack.c.l.b16 %v445
    %v683 = vunpack.c.h.b16 %v445
    %v684 = vunpack.c.l.b16 %v446
    %v685 = vunpack.c.h.b16 %v446
    %v686 = vunpack.c.l.b16 %v447
    %v687 = vunpack.c.h.b16 %v447
    %v688 = vunpack.c.l.b16 %v448
    %v689 = vunpack.c.h.b16 %v448
    %v690 = vunpack.c.l.b16 %v449
    %v691 = vunpack.c.h.b16 %v449
    %v692 = vunpack.c.l.b16 %v450
    %v693 = vunpack.c.h.b16 %v450
    %v694 = vunpack.c.l.b16 %v451
    %v695 = vunpack.c.h.b16 %v451
    %v696 = vunpack.c.l.b16 %v452
    %v697 = vunpack.c.h.b16 %v452
    %v698 = vunpack.c.l.b16 %v453
    %v699 = vunpack.c.h.b16 %v453
    %v700 = vunpack.c.l.b16 %v454
    %v701 = vunpack.c.h.b16 %v454
    %v702 = vunpack.c.l.b16 %v455
    %v703 = vunpack.c.h.b16 %v455
    %v704 = vunpack.c.l.b16 %v456
    %v705 = vunpack.c.h.b16 %v456
    %v706 = vunpack.c.l.b16 %v457
    %v707 = vunpack.c.h.b16 %v457
    %v708 = vunpack.c.l.b16 %v458
    %v709 = vunpack.c.h.b16 %v458
    %v710 = vunpack.c.l.b16 %v459
    %v711 = vunpack.c.h.b16 %v459
    %v712 = vunpack.c.l.b16 %v460
    %v713 = vunpack.c.h.b16 %v460
    %v714 = vunpack.c.l.b16 %v461
    %v715 = vunpack.c.h.b16 %v461
    %v716 = vunpack.c.l.b16 %v462
    %v717 = vunpack.c.h.b16 %v462
    %v718 = vunpack.c.l.b16 %v463
    %v719 = vunpack.c.h.b16 %v463
    %v720 = vunpack.c.l.b16 %v464
    %v721 = vunpack.c.h.b16 %v464
    %v722 = vunpack.c.l.b16 %v465
    %v723 = vunpack.c.h.b16 %v465
    %v724 = vunpack.c.l.b16 %v466
    %v725 = vunpack.c.h.b16 %v466
    %v726 = vunpack.c.l.b16 %v467
    %v727 = vunpack.c.h.b16 %v467
    %v728 = vunpack.c.l.b16 %v468
    %v729 = vunpack.c.h.b16 %v468
    %v730 = vunpack.c.l.b16 %v469
    %v731 = vunpack.c.h.b16 %v469
    %v732 = vunpack.c.l.b16 %v470
    %v733 = vunpack.c.h.b16 %v470
    %v734 = vunpack.c.l.b16 %v471
    %v735 = vunpack.c.h.b16 %v471
    %v736 = vunpack.c.l.b16 %v472
    %v737 = vunpack.c.h.b16 %v472
    %v738 = vunpack.c.l.b16 %v473
    %v739 = vunpack.c.h.b16 %v473
    %v740 = vunpack.c.l.b16 %v474
    %v741 = vunpack.c.h.b16 %v474
    %v742 = vunpack.c.l.b16 %v475
    %v743 = vunpack.c.h.b16 %v475
    %v744 = vunpack.c.l.b16 %v476
    %v745 = vunpack.c.h.b16 %v476
    %v746 = vunpack.c.l.b16 %v477
    %v747 = vunpack.c.h.b16 %v477
    %v748 = vunpack.c.l.b16 %v478
    %v749 = vunpack.c.h.b16 %v478
    %v750 = vunpack.c.l.b16 %v479
    %v751 = vunpack.c.h.b16 %v479
    %v752 = vunpack.c.l.b16 %v480
    %v753 = vunpack.c.h.b16 %v480
    %v754 = vunpack.c.l.b16 %v481
    %v755 = vunpack.c.h.b16 %v481
    %v756 = vunpack.c.l.b16 %v482
    %v757 = vunpack.c.h.b16 %v482
    %v758 = vunpack.c.l.b16 %v483
    %v759 = vunpack.c.h.b16 %v483
    %v760 = vunpack.c.l.b16 %v484
    %v761 = vunpack.c.h.b16 %v484
    %v762 = vunpack.c.l.b16 %v485
    %v763 = vunpack.c.h.b16 %v485
    %v764 = vunpack.c.l.b16 %v486
    %v765 = vunpack.c.h.b16 %v486
    %v766 = vunpack.c.l.b16 %v487
    %v767 = vunpack.c.h.b16 %v487
    %v768 = vunpack.c.l.b16 %v488
    %v769 = vunpack.c.h.b16 %v488
    %v770 = vunpack.c.l.b16 %v489
    %v771 = vunpack.c.h.b16 %v489
    %v772 = vpack.c.b16 %v678, %v676
    %v773 = vpack.c.b16 %v679, %v677
    %v774 = vpack.c.b16 %v682, %v680
    %v775 = vpack.c.b16 %v683, %v681
    %v776 = vpack.c.b16 %v686, %v684
    %v777 = vpack.c.b16 %v687, %v685
    %v778 = vpack.c.b16 %v690, %v688
    %v779 = vpack.c.b16 %v691, %v689
    %v780 = vpack.c.b16 %v694, %v692
    %v781 = vpack.c.b16 %v695, %v693
    %v782 = vpack.c.b16 %v698, %v696
    %v783 = vpack.c.b16 %v699, %v697
    %v784 = vpack.c.b16 %v702, %v700
    %v785 = vpack.c.b16 %v703, %v701
    %v786 = vpack.c.b16 %v706, %v704
    %v787 = vpack.c.b16 %v707, %v705
    %v788 = vpack.c.b16 %v710, %v708
    %v789 = vpack.c.b16 %v711, %v709
    %v790 = vpack.c.b16 %v714, %v712
    %v791 = vpack.c.b16 %v715, %v713
    %v792 = vpack.c.b16 %v718, %v716
    %v793 = vpack.c.b16 %v719, %v717
    %v794 = vpack.c.b16 %v722, %v720
    %v795 = vpack.c.b16 %v723, %v721
    %v796 = vpack.c.b16 %v726, %v724
    %v797 = vpack.c.b16 %v727, %v725
    %v798 = vpack.c.b16 %v730, %v728
    %v799 = vpack.c.b16 %v731, %v729
    %v800 = vpack.c.b16 %v734, %v732
    %v801 = vpack.c.b16 %v735, %v733
    %v802 = vpack.c.b16 %v738, %v736
    %v803 = vpack.c.b16 %v739, %v737
    %v804 = vpack.c.b16 %v742, %v740
    %v805 = vpack.c.b16 %v743, %v741
    %v806 = vpack.c.b16 %v746, %v744
    %v807 = vpack.c.b16 %v747, %v745
    %v808 = vpack.c.b16 %v750, %v748
    %v809 = vpack.c.b16 %v751, %v749
    %v810 = vpack.c.b16 %v754, %v752
    %v811 = vpack.c.b16 %v755, %v753
    %v812 = vpack.c.b16 %v758, %v756
    %v813 = vpack.c.b16 %v759, %v757
    %v814 = vpack.c.b16 %v762, %v760
    %v815 = vpack.c.b16 %v763, %v761
    %v816 = vpack.c.b16 %v766, %v764
    %v817 = vpack.c.b16 %v767, %v765
    %v818 = vpack.c.b16 %v770, %v768
    %v819 = vpack.c.b16 %v771, %v769
    %868 = vmatpush.bf16.msra.mxu0 %v786
    %869 = vmatpush.bf16.msra.mxu0 %v784
    %870 = vmatpush.bf16.msra.mxu0 %v782
    %871 = vmatpush.bf16.msra.mxu0 %v780
    %872 = vmatpush.bf16.msra.mxu0 %v778
    %873 = vmatpush.bf16.msra.mxu0 %v776
    %874 = vmatpush.bf16.msra.mxu0 %v774
    %875 = vmatpush.bf16.msra.mxu0 %v772
    %876 = vmatmul.bf16.gmra.mxu0 %v600
    %v877 = vpop.f32.mrf.mxu0
    %v878 = vadd.f32 0.0, %v877
    %v879 = vpop.f32.mrf.mxu0
    %v880 = vadd.f32 0.0, %v879
    %881 = vmatmul.bf16.gmra.mxu0 %v601
    %v882 = vpop.f32.mrf.mxu0
    %v883 = vadd.f32 0.0, %v882
    %v884 = vpop.f32.mrf.mxu0
    %v885 = vadd.f32 0.0, %v884
    %886 = vdwg.mxu0
    %887 = vmatpush.bf16.msra.mxu0 %v802
    %888 = vmatpush.bf16.msra.mxu0 %v800
    %889 = vmatpush.bf16.msra.mxu0 %v798
    %890 = vmatpush.bf16.msra.mxu0 %v796
    %891 = vmatpush.bf16.msra.mxu0 %v794
    %892 = vmatpush.bf16.msra.mxu0 %v792
    %893 = vmatpush.bf16.msra.mxu0 %v790
    %894 = vmatpush.bf16.msra.mxu0 %v788
    %895 = vmatmul.bf16.gmra.mxu0 %v612
    %v896 = vpop.f32.mrf.mxu0
    %v897 = vadd.f32 %v878, %v896
    %v898 = vpop.f32.mrf.mxu0
    %v899 = vadd.f32 %v880, %v898
    %900 = vmatmul.bf16.gmra.mxu0 %v613
    %v901 = vpop.f32.mrf.mxu0
    %v902 = vadd.f32 %v883, %v901
    %v903 = vpop.f32.mrf.mxu0
    %v904 = vadd.f32 %v885, %v903
    %905 = vdwg.mxu0
    %906 = vmatpush.bf16.msra.mxu0 %v818
    %907 = vmatpush.bf16.msra.mxu0 %v816
    %908 = vmatpush.bf16.msra.mxu0 %v814
    %909 = vmatpush.bf16.msra.mxu0 %v812
    %910 = vmatpush.bf16.msra.mxu0 %v810
    %911 = vmatpush.bf16.msra.mxu0 %v808
    %912 = vmatpush.bf16.msra.mxu0 %v806
    %913 = vmatpush.bf16.msra.mxu0 %v804
    %914 = vmatmul.bf16.gmra.mxu0 %v624
    %v915 = vpop.f32.mrf.mxu0
    %v916 = vadd.f32 %v897, %v915
    %v917 = vpop.f32.mrf.mxu0
    %v918 = vadd.f32 %v899, %v917
    %919 = vmatmul.bf16.gmra.mxu0 %v625
    %v920 = vpop.f32.mrf.mxu0
    %v921 = vadd.f32 %v902, %v920
    %v922 = vpop.f32.mrf.mxu0
    %v923 = vadd.f32 %v904, %v922
    %924 = vdwg.mxu0
    %925 = vmatpush.bf16.msra.mxu0 %v787
    %926 = vmatpush.bf16.msra.mxu0 %v785
    %927 = vmatpush.bf16.msra.mxu0 %v783
    %928 = vmatpush.bf16.msra.mxu0 %v781
    %929 = vmatpush.bf16.msra.mxu0 %v779
    %930 = vmatpush.bf16.msra.mxu0 %v777
    %931 = vmatpush.bf16.msra.mxu0 %v775
    %932 = vmatpush.bf16.msra.mxu0 %v773
    %933 = vmatmul.bf16.gmra.mxu0 %v600
    %v934 = vpop.f32.mrf.mxu0
    %v935 = vadd.f32 0.0, %v934
    %v936 = vpop.f32.mrf.mxu0
    %v937 = vadd.f32 0.0, %v936
    %938 = vmatmul.bf16.gmra.mxu0 %v601
    %v939 = vpop.f32.mrf.mxu0
    %v940 = vadd.f32 0.0, %v939
    %v941 = vpop.f32.mrf.mxu0
    %v942 = vadd.f32 0.0, %v941
    %943 = vdwg.mxu0
    %944 = vmatpush.bf16.msra.mxu0 %v803
    %945 = vmatpush.bf16.msra.mxu0 %v801
    %946 = vmatpush.bf16.msra.mxu0 %v799
    %947 = vmatpush.bf16.msra.mxu0 %v797
    %948 = vmatpush.bf16.msra.mxu0 %v795
    %949 = vmatpush.bf16.msra.mxu0 %v793
    %950 = vmatpush.bf16.msra.mxu0 %v791
    %951 = vmatpush.bf16.msra.mxu0 %v789
    %952 = vmatmul.bf16.gmra.mxu0 %v612
    %v953 = vpop.f32.mrf.mxu0
    %v954 = vadd.f32 %v935, %v953
    %v955 = vpop.f32.mrf.mxu0
    %v956 = vadd.f32 %v937, %v955
    %957 = vmatmul.bf16.gmra.mxu0 %v613
    %v958 = vpop.f32.mrf.mxu0
    %v959 = vadd.f32 %v940, %v958
    %v960 = vpop.f32.mrf.mxu0
    %v961 = vadd.f32 %v942, %v960
    %962 = vdwg.mxu0
    %963 = vmatpush.bf16.msra.mxu0 %v819
    %964 = vmatpush.bf16.msra.mxu0 %v817
    %965 = vmatpush.bf16.msra.mxu0 %v815
    %966 = vmatpush.bf16.msra.mxu0 %v813
    %967 = vmatpush.bf16.msra.mxu0 %v811
    %968 = vmatpush.bf16.msra.mxu0 %v809
    %969 = vmatpush.bf16.msra.mxu0 %v807
    %970 = vmatpush.bf16.msra.mxu0 %v805
    %971 = vmatmul.bf16.gmra.mxu0 %v624
    %v972 = vpop.f32.mrf.mxu0
    %v973 = vadd.f32 %v954, %v972
    %v974 = vpop.f32.mrf.mxu0
    %v975 = vadd.f32 %v956, %v974
    %976 = vmatmul.bf16.gmra.mxu0 %v625
    %v977 = vpop.f32.mrf.mxu0
    %v978 = vadd.f32 %v959, %v977
    %v979 = vpop.f32.mrf.mxu0
    %v980 = vadd.f32 %v961, %v979
    %981 = vdwg.mxu0
    %v982 = vperm.slane %v506, 0
    %v983 = vadd.f32 %v916, %v982
    %v984 = vadd.f32 %v918, %v982
    %v985 = vadd.f32 %v921, %v982
    %v986 = vadd.f32 %v923, %v982
    %v987 = vxor.u32 %v983, 2147483648
    %v988 = vxor.u32 %v984, 2147483648
    %v989 = vxor.u32 %v985, 2147483648
    %v990 = vxor.u32 %v986, 2147483648
    %v991 = vmul.f32 %v987, 1.442695
    %v992 = vpow.pop %v991
    %v993 = vmul.f32 %v988, 1.442695
    %v994 = vpow.pop %v993
    %v995 = vmul.f32 %v989, 1.442695
    %v996 = vpow.pop %v995
    %v997 = vmul.f32 %v990, 1.442695
    %v998 = vpow.pop %v997
    %v999 = vadd.f32 %v992, 1.0
    %v1000 = vadd.f32 %v994, 1.0
    %v1001 = vadd.f32 %v996, 1.0
    %v1002 = vadd.f32 %v998, 1.0
    %v1003 = vrcp.pop %v999
    %v1004 = vmul.f32 %v999, %v1003
    %v1005 = vsub.f32 1.0, %v1004
    %v1006 = vmul.f32 %v1003, %v1005
    %v1007 = vadd.f32 %v1003, %v1006
    %vm1008 = vweird.f32 %v999
    %vm1009 = vweird.f32 %v1003
    %vm1010 = vmor %vm1008, %vm1009
    %v1011 = vsel %vm1010, %v1003, %v1007
    %v1012 = vand.u32 2147483647, %v999
    %vm1013 = vcmp.eq.f32.partialorder %v1012, 8.507059e+37
    %v1014 = vand.u32 %v999, 2147483648
    %v1015 = vor.u32 1.1754944e-38, %v1014
    %v1016 = vsel %vm1013, %v1015, %v1011
    %v1017 = vmul.f32 1.0, %v1016
    %v1018 = vrcp.pop %v1000
    %v1019 = vmul.f32 %v1000, %v1018
    %v1020 = vsub.f32 1.0, %v1019
    %v1021 = vmul.f32 %v1018, %v1020
    %v1022 = vadd.f32 %v1018, %v1021
    %vm1023 = vweird.f32 %v1000
    %vm1024 = vweird.f32 %v1018
    %vm1025 = vmor %vm1023, %vm1024
    %v1026 = vsel %vm1025, %v1018, %v1022
    %v1027 = vand.u32 2147483647, %v1000
    %vm1028 = vcmp.eq.f32.partialorder %v1027, 8.507059e+37
    %v1029 = vand.u32 %v1000, 2147483648
    %v1030 = vor.u32 1.1754944e-38, %v1029
    %v1031 = vsel %vm1028, %v1030, %v1026
    %v1032 = vmul.f32 1.0, %v1031
    %v1033 = vrcp.pop %v1001
    %v1034 = vmul.f32 %v1001, %v1033
    %v1035 = vsub.f32 1.0, %v1034
    %v1036 = vmul.f32 %v1033, %v1035
    %v1037 = vadd.f32 %v1033, %v1036
    %vm1038 = vweird.f32 %v1001
    %vm1039 = vweird.f32 %v1033
    %vm1040 = vmor %vm1038, %vm1039
    %v1041 = vsel %vm1040, %v1033, %v1037
    %v1042 = vand.u32 2147483647, %v1001
    %vm1043 = vcmp.eq.f32.partialorder %v1042, 8.507059e+37
    %v1044 = vand.u32 %v1001, 2147483648
    %v1045 = vor.u32 1.1754944e-38, %v1044
    %v1046 = vsel %vm1043, %v1045, %v1041
    %v1047 = vmul.f32 1.0, %v1046
    %v1048 = vrcp.pop %v1002
    %v1049 = vmul.f32 %v1002, %v1048
    %v1050 = vsub.f32 1.0, %v1049
    %v1051 = vmul.f32 %v1048, %v1050
    %v1052 = vadd.f32 %v1048, %v1051
    %vm1053 = vweird.f32 %v1002
    %vm1054 = vweird.f32 %v1048
    %vm1055 = vmor %vm1053, %vm1054
    %v1056 = vsel %vm1055, %v1048, %v1052
    %v1057 = vand.u32 2147483647, %v1002
    %vm1058 = vcmp.eq.f32.partialorder %v1057, 8.507059e+37
    %v1059 = vand.u32 %v1002, 2147483648
    %v1060 = vor.u32 1.1754944e-38, %v1059
    %v1061 = vsel %vm1058, %v1060, %v1056
    %v1062 = vmul.f32 1.0, %v1061
    %v1063 = vmul.f32 %v1017, %v973
    %v1064 = vmul.f32 %v1032, %v975
    %v1065 = vmul.f32 %v1047, %v978
    %v1066 = vmul.f32 %v1062, %v980
    %v1067 = vpack.c.bf16 %v1063, %v1063
    %v1068 = vpack.c.bf16 %v1064, %v1064
    %v1069 = vpack.c.bf16 %v1065, %v1065
    %v1070 = vpack.c.bf16 %v1066, %v1066
    %v1071 = vpack.c.bf16 %v1017, %v1017
    %v1072 = vpack.c.bf16 %v1032, %v1032
    %v1073 = vpack.c.bf16 %v1047, %v1047
    %v1074 = vpack.c.bf16 %v1062, %v1062
    %v1079 = vunpack.c.l.b16 %v1067
    %v1080 = vunpack.c.l.b16 %v1068
    %v1081 = vunpack.c.l.b16 %v1069
    %v1082 = vunpack.c.l.b16 %v1070
    %v1083 = vpack.c.b16 %v1080, %v1079
    %v1084 = vpack.c.b16 %v1082, %v1081
    %v1091 = vunpack.c.l.b16 %v1071
    %v1092 = vunpack.c.l.b16 %v1072
    %v1093 = vunpack.c.l.b16 %v1073
    %v1094 = vunpack.c.l.b16 %v1074
    %v1095 = vpack.c.b16 %v1092, %v1091
    %v1096 = vpack.c.b16 %v1094, %v1093
    %1101 = vxpose.xlu0.c.b16.start [1/8] %v553, 128
    %1102 = vxpose.xlu0.c.b16.cont [2/8] %v554, 128
    %1103 = vxpose.xlu0.c.b16.cont [3/8] 0, 128
    %1104 = vxpose.xlu0.c.b16.cont [4/8] 0, 128
    %1105 = vxpose.xlu0.c.b16.cont [5/8] 0, 128
    %1106 = vxpose.xlu0.c.b16.cont [6/8] 0, 128
    %1107 = vxpose.xlu0.c.b16.cont [7/8] 0, 128
    %1108 = vxpose.xlu0.c.b16.end [8/8] 0, 128
    %v1109 = vpop.trf.xlu0
    %v1110 = vpop.trf.xlu0
    %v1111 = vpop.trf.xlu0
    %v1112 = vpop.trf.xlu0
    %v1113 = vpop.trf.xlu0
    %v1114 = vpop.trf.xlu0
    %v1115 = vpop.trf.xlu0
    %v1116 = vpop.trf.xlu0
    %vm1117 = vcmask 261120
    %v1119 = vsel %vm1117, %v1109, 0
    %1121 = vmatpush.bf16.msra.mxu0 0
    %1122 = vmatpush.bf16.msra.mxu0 0
    %1123 = vmatpush.bf16.msra.mxu0 0
    %1124 = vmatpush.bf16.msra.mxu0 0
    %1125 = vmatpush.bf16.msra.mxu0 0
    %1126 = vmatpush.bf16.msra.mxu0 0
    %1127 = vmatpush.bf16.msra.mxu0 %v1084
    %1128 = vmatpush.bf16.msra.mxu0 %v1083
    %1129 = vmatmul.bf16.gmra.mxu0 %v1119
    %v1130 = vpop.f32.mrf.mxu0
    %v1131 = vadd.f32 0.0, %v1130
    %v1132 = vpop.f32.mrf.mxu0
    %v1133 = vadd.f32 0.0, %v1132
    %1134 = vdwg.mxu0
    %1135 = vmatpush.bf16.msra.mxu0 0
    %1136 = vmatpush.bf16.msra.mxu0 0
    %1137 = vmatpush.bf16.msra.mxu0 0
    %1138 = vmatpush.bf16.msra.mxu0 0
    %1139 = vmatpush.bf16.msra.mxu0 0
    %1140 = vmatpush.bf16.msra.mxu0 0
    %1141 = vmatpush.bf16.msra.mxu0 %v1096
    %1142 = vmatpush.bf16.msra.mxu0 %v1095
    %1143 = vmatmul.bf16.gmra.mxu0 %v1119
    %v1144 = vpop.f32.mrf.mxu0
    %v1145 = vadd.f32 0.0, %v1144
    %v1146 = vpop.f32.mrf.mxu0
    %v1147 = vadd.f32 0.0, %v1146
    %1148 = vdwg.mxu0
    %v1149 = vperm.slane %v507, 0
    %v1166 = vunpack.c.l.b16 %v490
    %v1167 = vunpack.c.l.b16 %v491
    %v1168 = vunpack.c.l.b16 %v492
    %v1169 = vunpack.c.l.b16 %v493
    %v1170 = vunpack.c.l.b16 %v494
    %v1171 = vunpack.c.l.b16 %v495
    %v1172 = vunpack.c.l.b16 %v496
    %v1173 = vunpack.c.l.b16 %v497
    %v1174 = vunpack.c.l.b16 %v498
    %v1175 = vunpack.c.l.b16 %v499
    %v1176 = vunpack.c.l.b16 %v500
    %v1177 = vunpack.c.l.b16 %v501
    %v1178 = vunpack.c.l.b16 %v502
    %v1179 = vunpack.c.l.b16 %v503
    %v1180 = vunpack.c.l.b16 %v504
    %v1181 = vunpack.c.l.b16 %v505
    %v1182 = vpack.c.b16 %v1167, %v1166
    %v1183 = vpack.c.b16 %v1169, %v1168
    %v1184 = vpack.c.b16 %v1171, %v1170
    %v1185 = vpack.c.b16 %v1173, %v1172
    %v1186 = vpack.c.b16 %v1175, %v1174
    %v1187 = vpack.c.b16 %v1177, %v1176
    %v1188 = vpack.c.b16 %v1179, %v1178
    %v1189 = vpack.c.b16 %v1181, %v1180
    %1198 = vmatpush.bf16.msra.mxu0 %v1189
    %1199 = vmatpush.bf16.msra.mxu0 %v1188
    %1200 = vmatpush.bf16.msra.mxu0 %v1187
    %1201 = vmatpush.bf16.msra.mxu0 %v1186
    %1202 = vmatpush.bf16.msra.mxu0 %v1185
    %1203 = vmatpush.bf16.msra.mxu0 %v1184
    %1204 = vmatpush.bf16.msra.mxu0 %v1183
    %1205 = vmatpush.bf16.msra.mxu0 %v1182
    %1206 = vmatmul.bf16.gmra.mxu0 %v508
    %v1207 = vpop.f32.mrf.mxu0
    %v1208 = vadd.f32 %v1149, %v1207
    %v1209 = vpop.f32.mrf.mxu0
    %v1210 = vadd.f32 %v1149, %v1209
    %1211 = vdwg.mxu0
    %v1212 = vadd.f32 %v1145, 1e-06
    %v1213 = vadd.f32 %v1147, 1e-06
    %v1214 = vrcp.pop %v1212
    %v1215 = vrcp.pop %v1213
    %v1216 = vmul.f32 %v1131, %v1214
    %v1217 = vmul.f32 %v1133, %v1215
    %v1218 = vadd.f32 %v1208, %v1216
    %v1219 = vadd.f32 %v1210, %v1217
    %v1220 = vmax.f32 %v1218, 0.0
    %v1221 = vmax.f32 %v1219, 0.0
    %v1222 = vadd.f32 %v313, %v1220
    %v1223 = vadd.f32 %v315, %v1221
    %v1224 = vmax.f32 %v983, 0.0
    %v1225 = vmax.f32 %v984, 0.0
    %v1226 = vmax.f32 %v985, 0.0
    %v1227 = vmax.f32 %v986, 0.0
    %v1228 = vadd.f32 %v425, %v1224
    %v1229 = vadd.f32 %v427, %v1225
    %v1230 = vadd.f32 %v430, %v1226
    %v1231 = vadd.f32 %v432, %v1227
    %s1232 = scalar_lea.vmem [#allocation2], 384
    %v1233 = vld [vmem:[%s1232] sm:$0xff]
    %v1234 = vld [vmem:[%s1232 + $0x8] sm:$0xff]
    %v1235 = vld [vmem:[%s1232 + $0x10] sm:$0xff]
    %v1236 = vld [vmem:[%s1232 + $0x18] sm:$0xff]
    %v1237 = vld [vmem:[%s1232 + $0x20] sm:$0xff]
    %v1238 = vld [vmem:[%s1232 + $0x28] sm:$0xff]
    %v1239 = vld [vmem:[%s1232 + $0x30] sm:$0xff]
    %v1240 = vld [vmem:[%s1232 + $0x38] sm:$0xff]
    %v1241 = vld [vmem:[%s1232 + $0x40] sm:$0xff]
    %v1242 = vld [vmem:[%s1232 + $0x48] sm:$0xff]
    %v1243 = vld [vmem:[%s1232 + $0x50] sm:$0xff]
    %v1244 = vld [vmem:[%s1232 + $0x58] sm:$0xff]
    %v1245 = vld [vmem:[%s1232 + $0x60] sm:$0xff]
    %v1246 = vld [vmem:[%s1232 + $0x68] sm:$0xff]
    %v1247 = vld [vmem:[%s1232 + $0x70] sm:$0xff]
    %v1248 = vld [vmem:[%s1232 + $0x78] sm:$0xff]
    %v1249 = vld [vmem:[%s1232 + $0x80] sm:$0xff]
    %v1250 = vld [vmem:[%s1232 + $0x88] sm:$0xff]
    %v1251 = vld [vmem:[%s1232 + $0x90] sm:$0xff]
    %v1252 = vld [vmem:[%s1232 + $0x98] sm:$0xff]
    %v1253 = vld [vmem:[%s1232 + $0xa0] sm:$0xff]
    %v1254 = vld [vmem:[%s1232 + $0xa8] sm:$0xff]
    %v1255 = vld [vmem:[%s1232 + $0xb0] sm:$0xff]
    %v1256 = vld [vmem:[%s1232 + $0xb8] sm:$0xff]
    %v1257 = vld [vmem:[%s1232 + $0xc0] sm:$0xff]
    %v1258 = vld [vmem:[%s1232 + $0xc8] sm:$0xff]
    %v1259 = vld [vmem:[%s1232 + $0xd0] sm:$0xff]
    %v1260 = vld [vmem:[%s1232 + $0xd8] sm:$0xff]
    %v1261 = vld [vmem:[%s1232 + $0xe0] sm:$0xff]
    %v1262 = vld [vmem:[%s1232 + $0xe8] sm:$0xff]
    %v1263 = vld [vmem:[%s1232 + $0xf0] sm:$0xff]
    %v1264 = vld [vmem:[%s1232 + $0xf8] sm:$0xff]
    %v1265 = vld [vmem:[%s1232 + $0x100] sm:$0xff]
    %v1266 = vld [vmem:[%s1232 + $0x108] sm:$0xff]
    %v1267 = vld [vmem:[%s1232 + $0x110] sm:$0xff]
    %v1268 = vld [vmem:[%s1232 + $0x118] sm:$0xff]
    %v1269 = vld [vmem:[%s1232 + $0x120] sm:$0xff]
    %v1270 = vld [vmem:[%s1232 + $0x128] sm:$0xff]
    %v1271 = vld [vmem:[%s1232 + $0x130] sm:$0xff]
    %v1272 = vld [vmem:[%s1232 + $0x138] sm:$0xff]
    %v1273 = vld [vmem:[%s1232 + $0x140] sm:$0xff]
    %v1274 = vld [vmem:[%s1232 + $0x148] sm:$0xff]
    %v1275 = vld [vmem:[%s1232 + $0x150] sm:$0xff]
    %v1276 = vld [vmem:[%s1232 + $0x158] sm:$0xff]
    %v1277 = vld [vmem:[%s1232 + $0x160] sm:$0xff]
    %v1278 = vld [vmem:[%s1232 + $0x168] sm:$0xff]
    %v1279 = vld [vmem:[%s1232 + $0x170] sm:$0xff]
    %v1280 = vld [vmem:[%s1232 + $0x178] sm:$0xff]
    %s1281 = scalar_lea.vmem [#allocation4], 64
    %v1282 = vld [vmem:[%s1281] sm:$0xf]
    %v1283 = vld [vmem:[%s1281 + $0x4] sm:$0xf]
    %v1284 = vld [vmem:[%s1281 + $0x8] sm:$0xf]
    %v1285 = vld [vmem:[%s1281 + $0xc] sm:$0xf]
    %v1286 = vld [vmem:[%s1281 + $0x10] sm:$0xf]
    %v1287 = vld [vmem:[%s1281 + $0x14] sm:$0xf]
    %v1288 = vld [vmem:[%s1281 + $0x18] sm:$0xf]
    %v1289 = vld [vmem:[%s1281 + $0x1c] sm:$0xf]
    %v1290 = vld [vmem:[%s1281 + $0x20] sm:$0xf]
    %v1291 = vld [vmem:[%s1281 + $0x24] sm:$0xf]
    %v1292 = vld [vmem:[%s1281 + $0x28] sm:$0xf]
    %v1293 = vld [vmem:[%s1281 + $0x2c] sm:$0xf]
    %v1294 = vld [vmem:[%s1281 + $0x30] sm:$0xf]
    %v1295 = vld [vmem:[%s1281 + $0x34] sm:$0xf]
    %v1296 = vld [vmem:[%s1281 + $0x38] sm:$0xf]
    %v1297 = vld [vmem:[%s1281 + $0x3c] sm:$0xf]
    %v1298 = vld [vmem:[%s10 + $0x1] sm:$0x1]
    %v1299 = vld [vmem:[%s11 + $0x1] sm:$0x1]
    %v1300 = vpack.c.bf16 %v1223, %v1222
    %1301 = vmatpush.bf16.msra.mxu0 0
    %1302 = vmatpush.bf16.msra.mxu0 0
    %1303 = vmatpush.bf16.msra.mxu0 0
    %1304 = vmatpush.bf16.msra.mxu0 0
    %1305 = vmatpush.bf16.msra.mxu0 0
    %1306 = vmatpush.bf16.msra.mxu0 0
    %1307 = vmatpush.bf16.msra.mxu0 0
    %1308 = vmatpush.bf16.msra.mxu0 %v1300
    %1309 = vmatmul.bf16.gmra.mxu0 %v521
    %v1310 = vpop.f32.mrf.mxu0
    %v1311 = vadd.f32 0.0, %v1310
    %v1312 = vpop.f32.mrf.mxu0
    %v1313 = vadd.f32 0.0, %v1312
    %1314 = vmatmul.bf16.gmra.mxu0 %v524
    %v1315 = vpop.f32.mrf.mxu0
    %v1316 = vadd.f32 0.0, %v1315
    %v1317 = vpop.f32.mrf.mxu0
    %v1318 = vadd.f32 0.0, %v1317
    %1319 = vdwg.mxu0
    %1320 = vmatpush.bf16.msra.mxu0 0
    %1321 = vmatpush.bf16.msra.mxu0 0
    %1322 = vmatpush.bf16.msra.mxu0 0
    %1323 = vmatpush.bf16.msra.mxu0 0
    %1324 = vmatpush.bf16.msra.mxu0 0
    %1325 = vmatpush.bf16.msra.mxu0 0
    %1326 = vmatpush.bf16.msra.mxu0 0
    %1327 = vmatpush.bf16.msra.mxu0 %v1300
    %1328 = vmatmul.bf16.gmra.mxu0 %v556
    %v1329 = vpop.f32.mrf.mxu0
    %v1330 = vadd.f32 0.0, %v1329
    %v1331 = vpop.f32.mrf.mxu0
    %v1332 = vadd.f32 0.0, %v1331
    %1333 = vmatmul.bf16.gmra.mxu0 %v559
    %v1334 = vpop.f32.mrf.mxu0
    %v1335 = vadd.f32 0.0, %v1334
    %v1336 = vpop.f32.mrf.mxu0
    %v1337 = vadd.f32 0.0, %v1336
    %1338 = vdwg.mxu0
    %v1339 = vpack.c.bf16 %v1330, %v1330
    %v1340 = vpack.c.bf16 %v1332, %v1332
    %v1341 = vpack.c.bf16 %v1335, %v1335
    %v1342 = vpack.c.bf16 %v1337, %v1337
    %v1343 = vpack.c.bf16 %v1311, %v1311
    %v1344 = vpack.c.bf16 %v1313, %v1313
    %v1345 = vpack.c.bf16 %v1316, %v1316
    %v1346 = vpack.c.bf16 %v1318, %v1318
    %v1347 = vpack.c.bf16 %v1228, %v1228
    %v1348 = vpack.c.bf16 %v1229, %v1229
    %v1349 = vpack.c.bf16 %v1230, %v1230
    %v1350 = vpack.c.bf16 %v1231, %v1231
    %v1355 = vunpack.c.l.b16 %v1339
    %v1356 = vunpack.c.l.b16 %v1340
    %v1357 = vunpack.c.l.b16 %v1341
    %v1358 = vunpack.c.l.b16 %v1342
    %v1359 = vpack.c.b16 %v1356, %v1355
    %v1360 = vpack.c.b16 %v1358, %v1357
    %v1367 = vunpack.c.l.b16 %v1343
    %v1368 = vunpack.c.l.b16 %v1344
    %v1369 = vunpack.c.l.b16 %v1345
    %v1370 = vunpack.c.l.b16 %v1346
    %v1371 = vpack.c.b16 %v1368, %v1367
    %v1372 = vpack.c.b16 %v1370, %v1369
    %v1379 = vunpack.c.l.b16 %v1347
    %v1380 = vunpack.c.l.b16 %v1348
    %v1381 = vunpack.c.l.b16 %v1349
    %v1382 = vunpack.c.l.b16 %v1350
    %v1383 = vpack.c.b16 %v1380, %v1379
    %v1384 = vpack.c.b16 %v1382, %v1381
    %v1435 = vunpack.c.l.b16 %v1233
    %v1436 = vunpack.c.h.b16 %v1233
    %v1437 = vunpack.c.l.b16 %v1234
    %v1438 = vunpack.c.h.b16 %v1234
    %v1439 = vunpack.c.l.b16 %v1235
    %v1440 = vunpack.c.h.b16 %v1235
    %v1441 = vunpack.c.l.b16 %v1236
    %v1442 = vunpack.c.h.b16 %v1236
    %v1443 = vunpack.c.l.b16 %v1237
    %v1444 = vunpack.c.h.b16 %v1237
    %v1445 = vunpack.c.l.b16 %v1238
    %v1446 = vunpack.c.h.b16 %v1238
    %v1447 = vunpack.c.l.b16 %v1239
    %v1448 = vunpack.c.h.b16 %v1239
    %v1449 = vunpack.c.l.b16 %v1240
    %v1450 = vunpack.c.h.b16 %v1240
    %v1451 = vunpack.c.l.b16 %v1241
    %v1452 = vunpack.c.h.b16 %v1241
    %v1453 = vunpack.c.l.b16 %v1242
    %v1454 = vunpack.c.h.b16 %v1242
    %v1455 = vunpack.c.l.b16 %v1243
    %v1456 = vunpack.c.h.b16 %v1243
    %v1457 = vunpack.c.l.b16 %v1244
    %v1458 = vunpack.c.h.b16 %v1244
    %v1459 = vunpack.c.l.b16 %v1245
    %v1460 = vunpack.c.h.b16 %v1245
    %v1461 = vunpack.c.l.b16 %v1246
    %v1462 = vunpack.c.h.b16 %v1246
    %v1463 = vunpack.c.l.b16 %v1247
    %v1464 = vunpack.c.h.b16 %v1247
    %v1465 = vunpack.c.l.b16 %v1248
    %v1466 = vunpack.c.h.b16 %v1248
    %v1467 = vunpack.c.l.b16 %v1249
    %v1468 = vunpack.c.h.b16 %v1249
    %v1469 = vunpack.c.l.b16 %v1250
    %v1470 = vunpack.c.h.b16 %v1250
    %v1471 = vunpack.c.l.b16 %v1251
    %v1472 = vunpack.c.h.b16 %v1251
    %v1473 = vunpack.c.l.b16 %v1252
    %v1474 = vunpack.c.h.b16 %v1252
    %v1475 = vunpack.c.l.b16 %v1253
    %v1476 = vunpack.c.h.b16 %v1253
    %v1477 = vunpack.c.l.b16 %v1254
    %v1478 = vunpack.c.h.b16 %v1254
    %v1479 = vunpack.c.l.b16 %v1255
    %v1480 = vunpack.c.h.b16 %v1255
    %v1481 = vunpack.c.l.b16 %v1256
    %v1482 = vunpack.c.h.b16 %v1256
    %v1483 = vunpack.c.l.b16 %v1257
    %v1484 = vunpack.c.h.b16 %v1257
    %v1485 = vunpack.c.l.b16 %v1258
    %v1486 = vunpack.c.h.b16 %v1258
    %v1487 = vunpack.c.l.b16 %v1259
    %v1488 = vunpack.c.h.b16 %v1259
    %v1489 = vunpack.c.l.b16 %v1260
    %v1490 = vunpack.c.h.b16 %v1260
    %v1491 = vunpack.c.l.b16 %v1261
    %v1492 = vunpack.c.h.b16 %v1261
    %v1493 = vunpack.c.l.b16 %v1262
    %v1494 = vunpack.c.h.b16 %v1262
    %v1495 = vunpack.c.l.b16 %v1263
    %v1496 = vunpack.c.h.b16 %v1263
    %v1497 = vunpack.c.l.b16 %v1264
    %v1498 = vunpack.c.h.b16 %v1264
    %v1499 = vunpack.c.l.b16 %v1265
    %v1500 = vunpack.c.h.b16 %v1265
    %v1501 = vunpack.c.l.b16 %v1266
    %v1502 = vunpack.c.h.b16 %v1266
    %v1503 = vunpack.c.l.b16 %v1267
    %v1504 = vunpack.c.h.b16 %v1267
    %v1505 = vunpack.c.l.b16 %v1268
    %v1506 = vunpack.c.h.b16 %v1268
    %v1507 = vunpack.c.l.b16 %v1269
    %v1508 = vunpack.c.h.b16 %v1269
    %v1509 = vunpack.c.l.b16 %v1270
    %v1510 = vunpack.c.h.b16 %v1270
    %v1511 = vunpack.c.l.b16 %v1271
    %v1512 = vunpack.c.h.b16 %v1271
    %v1513 = vunpack.c.l.b16 %v1272
    %v1514 = vunpack.c.h.b16 %v1272
    %v1515 = vunpack.c.l.b16 %v1273
    %v1516 = vunpack.c.h.b16 %v1273
    %v1517 = vunpack.c.l.b16 %v1274
    %v1518 = vunpack.c.h.b16 %v1274
    %v1519 = vunpack.c.l.b16 %v1275
    %v1520 = vunpack.c.h.b16 %v1275
    %v1521 = vunpack.c.l.b16 %v1276
    %v1522 = vunpack.c.h.b16 %v1276
    %v1523 = vunpack.c.l.b16 %v1277
    %v1524 = vunpack.c.h.b16 %v1277
    %v1525 = vunpack.c.l.b16 %v1278
    %v1526 = vunpack.c.h.b16 %v1278
    %v1527 = vunpack.c.l.b16 %v1279
    %v1528 = vunpack.c.h.b16 %v1279
    %v1529 = vunpack.c.l.b16 %v1280
    %v1530 = vunpack.c.h.b16 %v1280
    %v1531 = vpack.c.b16 %v1437, %v1435
    %v1532 = vpack.c.b16 %v1438, %v1436
    %v1533 = vpack.c.b16 %v1441, %v1439
    %v1534 = vpack.c.b16 %v1442, %v1440
    %v1535 = vpack.c.b16 %v1445, %v1443
    %v1536 = vpack.c.b16 %v1446, %v1444
    %v1537 = vpack.c.b16 %v1449, %v1447
    %v1538 = vpack.c.b16 %v1450, %v1448
    %v1539 = vpack.c.b16 %v1453, %v1451
    %v1540 = vpack.c.b16 %v1454, %v1452
    %v1541 = vpack.c.b16 %v1457, %v1455
    %v1542 = vpack.c.b16 %v1458, %v1456
    %v1543 = vpack.c.b16 %v1461, %v1459
    %v1544 = vpack.c.b16 %v1462, %v1460
    %v1545 = vpack.c.b16 %v1465, %v1463
    %v1546 = vpack.c.b16 %v1466, %v1464
    %v1547 = vpack.c.b16 %v1469, %v1467
    %v1548 = vpack.c.b16 %v1470, %v1468
    %v1549 = vpack.c.b16 %v1473, %v1471
    %v1550 = vpack.c.b16 %v1474, %v1472
    %v1551 = vpack.c.b16 %v1477, %v1475
    %v1552 = vpack.c.b16 %v1478, %v1476
    %v1553 = vpack.c.b16 %v1481, %v1479
    %v1554 = vpack.c.b16 %v1482, %v1480
    %v1555 = vpack.c.b16 %v1485, %v1483
    %v1556 = vpack.c.b16 %v1486, %v1484
    %v1557 = vpack.c.b16 %v1489, %v1487
    %v1558 = vpack.c.b16 %v1490, %v1488
    %v1559 = vpack.c.b16 %v1493, %v1491
    %v1560 = vpack.c.b16 %v1494, %v1492
    %v1561 = vpack.c.b16 %v1497, %v1495
    %v1562 = vpack.c.b16 %v1498, %v1496
    %v1563 = vpack.c.b16 %v1501, %v1499
    %v1564 = vpack.c.b16 %v1502, %v1500
    %v1565 = vpack.c.b16 %v1505, %v1503
    %v1566 = vpack.c.b16 %v1506, %v1504
    %v1567 = vpack.c.b16 %v1509, %v1507
    %v1568 = vpack.c.b16 %v1510, %v1508
    %v1569 = vpack.c.b16 %v1513, %v1511
    %v1570 = vpack.c.b16 %v1514, %v1512
    %v1571 = vpack.c.b16 %v1517, %v1515
    %v1572 = vpack.c.b16 %v1518, %v1516
    %v1573 = vpack.c.b16 %v1521, %v1519
    %v1574 = vpack.c.b16 %v1522, %v1520
    %v1575 = vpack.c.b16 %v1525, %v1523
    %v1576 = vpack.c.b16 %v1526, %v1524
    %v1577 = vpack.c.b16 %v1529, %v1527
    %v1578 = vpack.c.b16 %v1530, %v1528
    %1627 = vmatpush.bf16.msra.mxu0 %v1545
    %1628 = vmatpush.bf16.msra.mxu0 %v1543
    %1629 = vmatpush.bf16.msra.mxu0 %v1541
    %1630 = vmatpush.bf16.msra.mxu0 %v1539
    %1631 = vmatpush.bf16.msra.mxu0 %v1537
    %1632 = vmatpush.bf16.msra.mxu0 %v1535
    %1633 = vmatpush.bf16.msra.mxu0 %v1533
    %1634 = vmatpush.bf16.msra.mxu0 %v1531
    %1635 = vmatmul.bf16.gmra.mxu0 %v1359
    %v1636 = vpop.f32.mrf.mxu0
    %v1637 = vadd.f32 0.0, %v1636
    %v1638 = vpop.f32.mrf.mxu0
    %v1639 = vadd.f32 0.0, %v1638
    %1640 = vmatmul.bf16.gmra.mxu0 %v1360
    %v1641 = vpop.f32.mrf.mxu0
    %v1642 = vadd.f32 0.0, %v1641
    %v1643 = vpop.f32.mrf.mxu0
    %v1644 = vadd.f32 0.0, %v1643
    %1645 = vdwg.mxu0
    %1646 = vmatpush.bf16.msra.mxu0 %v1561
    %1647 = vmatpush.bf16.msra.mxu0 %v1559
    %1648 = vmatpush.bf16.msra.mxu0 %v1557
    %1649 = vmatpush.bf16.msra.mxu0 %v1555
    %1650 = vmatpush.bf16.msra.mxu0 %v1553
    %1651 = vmatpush.bf16.msra.mxu0 %v1551
    %1652 = vmatpush.bf16.msra.mxu0 %v1549
    %1653 = vmatpush.bf16.msra.mxu0 %v1547
    %1654 = vmatmul.bf16.gmra.mxu0 %v1371
    %v1655 = vpop.f32.mrf.mxu0
    %v1656 = vadd.f32 %v1637, %v1655
    %v1657 = vpop.f32.mrf.mxu0
    %v1658 = vadd.f32 %v1639, %v1657
    %1659 = vmatmul.bf16.gmra.mxu0 %v1372
    %v1660 = vpop.f32.mrf.mxu0
    %v1661 = vadd.f32 %v1642, %v1660
    %v1662 = vpop.f32.mrf.mxu0
    %v1663 = vadd.f32 %v1644, %v1662
    %1664 = vdwg.mxu0
    %1665 = vmatpush.bf16.msra.mxu0 %v1577
    %1666 = vmatpush.bf16.msra.mxu0 %v1575
    %1667 = vmatpush.bf16.msra.mxu0 %v1573
    %1668 = vmatpush.bf16.msra.mxu0 %v1571
    %1669 = vmatpush.bf16.msra.mxu0 %v1569
    %1670 = vmatpush.bf16.msra.mxu0 %v1567
    %1671 = vmatpush.bf16.msra.mxu0 %v1565
    %1672 = vmatpush.bf16.msra.mxu0 %v1563
    %1673 = vmatmul.bf16.gmra.mxu0 %v1383
    %v1674 = vpop.f32.mrf.mxu0
    %v1675 = vadd.f32 %v1656, %v1674
    %v1676 = vpop.f32.mrf.mxu0
    %v1677 = vadd.f32 %v1658, %v1676
    %1678 = vmatmul.bf16.gmra.mxu0 %v1384
    %v1679 = vpop.f32.mrf.mxu0
    %v1680 = vadd.f32 %v1661, %v1679
    %v1681 = vpop.f32.mrf.mxu0
    %v1682 = vadd.f32 %v1663, %v1681
    %1683 = vdwg.mxu0
    %1684 = vmatpush.bf16.msra.mxu0 %v1546
    %1685 = vmatpush.bf16.msra.mxu0 %v1544
    %1686 = vmatpush.bf16.msra.mxu0 %v1542
    %1687 = vmatpush.bf16.msra.mxu0 %v1540
    %1688 = vmatpush.bf16.msra.mxu0 %v1538
    %1689 = vmatpush.bf16.msra.mxu0 %v1536
    %1690 = vmatpush.bf16.msra.mxu0 %v1534
    %1691 = vmatpush.bf16.msra.mxu0 %v1532
    %1692 = vmatmul.bf16.gmra.mxu0 %v1359
    %v1693 = vpop.f32.mrf.mxu0
    %v1694 = vadd.f32 0.0, %v1693
    %v1695 = vpop.f32.mrf.mxu0
    %v1696 = vadd.f32 0.0, %v1695
    %1697 = vmatmul.bf16.gmra.mxu0 %v1360
    %v1698 = vpop.f32.mrf.mxu0
    %v1699 = vadd.f32 0.0, %v1698
    %v1700 = vpop.f32.mrf.mxu0
    %v1701 = vadd.f32 0.0, %v1700
    %1702 = vdwg.mxu0
    %1703 = vmatpush.bf16.msra.mxu0 %v1562
    %1704 = vmatpush.bf16.msra.mxu0 %v1560
    %1705 = vmatpush.bf16.msra.mxu0 %v1558
    %1706 = vmatpush.bf16.msra.mxu0 %v1556
    %1707 = vmatpush.bf16.msra.mxu0 %v1554
    %1708 = vmatpush.bf16.msra.mxu0 %v1552
    %1709 = vmatpush.bf16.msra.mxu0 %v1550
    %1710 = vmatpush.bf16.msra.mxu0 %v1548
    %1711 = vmatmul.bf16.gmra.mxu0 %v1371
    %v1712 = vpop.f32.mrf.mxu0
    %v1713 = vadd.f32 %v1694, %v1712
    %v1714 = vpop.f32.mrf.mxu0
    %v1715 = vadd.f32 %v1696, %v1714
    %1716 = vmatmul.bf16.gmra.mxu0 %v1372
    %v1717 = vpop.f32.mrf.mxu0
    %v1718 = vadd.f32 %v1699, %v1717
    %v1719 = vpop.f32.mrf.mxu0
    %v1720 = vadd.f32 %v1701, %v1719
    %1721 = vdwg.mxu0
    %1722 = vmatpush.bf16.msra.mxu0 %v1578
    %1723 = vmatpush.bf16.msra.mxu0 %v1576
    %1724 = vmatpush.bf16.msra.mxu0 %v1574
    %1725 = vmatpush.bf16.msra.mxu0 %v1572
    %1726 = vmatpush.bf16.msra.mxu0 %v1570
    %1727 = vmatpush.bf16.msra.mxu0 %v1568
    %1728 = vmatpush.bf16.msra.mxu0 %v1566
    %1729 = vmatpush.bf16.msra.mxu0 %v1564
    %1730 = vmatmul.bf16.gmra.mxu0 %v1383
    %v1731 = vpop.f32.mrf.mxu0
    %v1732 = vadd.f32 %v1713, %v1731
    %v1733 = vpop.f32.mrf.mxu0
    %v1734 = vadd.f32 %v1715, %v1733
    %1735 = vmatmul.bf16.gmra.mxu0 %v1384
    %v1736 = vpop.f32.mrf.mxu0
    %v1737 = vadd.f32 %v1718, %v1736
    %v1738 = vpop.f32.mrf.mxu0
    %v1739 = vadd.f32 %v1720, %v1738
    %1740 = vdwg.mxu0
    %v1741 = vperm.slane %v1298, 0
    %v1742 = vadd.f32 %v1675, %v1741
    %v1743 = vadd.f32 %v1677, %v1741
    %v1744 = vadd.f32 %v1680, %v1741
    %v1745 = vadd.f32 %v1682, %v1741
    %v1746 = vxor.u32 %v1742, 2147483648
    %v1747 = vxor.u32 %v1743, 2147483648
    %v1748 = vxor.u32 %v1744, 2147483648
    %v1749 = vxor.u32 %v1745, 2147483648
    %v1750 = vmul.f32 %v1746, 1.442695
    %v1751 = vpow.pop %v1750
    %v1752 = vmul.f32 %v1747, 1.442695
    %v1753 = vpow.pop %v1752
    %v1754 = vmul.f32 %v1748, 1.442695
    %v1755 = vpow.pop %v1754
    %v1756 = vmul.f32 %v1749, 1.442695
    %v1757 = vpow.pop %v1756
    %v1758 = vadd.f32 %v1751, 1.0
    %v1759 = vadd.f32 %v1753, 1.0
    %v1760 = vadd.f32 %v1755, 1.0
    %v1761 = vadd.f32 %v1757, 1.0
    %v1762 = vrcp.pop %v1758
    %v1763 = vmul.f32 %v1758, %v1762
    %v1764 = vsub.f32 1.0, %v1763
    %v1765 = vmul.f32 %v1762, %v1764
    %v1766 = vadd.f32 %v1762, %v1765
    %vm1767 = vweird.f32 %v1758
    %vm1768 = vweird.f32 %v1762
    %vm1769 = vmor %vm1767, %vm1768
    %v1770 = vsel %vm1769, %v1762, %v1766
    %v1771 = vand.u32 2147483647, %v1758
    %vm1772 = vcmp.eq.f32.partialorder %v1771, 8.507059e+37
    %v1773 = vand.u32 %v1758, 2147483648
    %v1774 = vor.u32 1.1754944e-38, %v1773
    %v1775 = vsel %vm1772, %v1774, %v1770
    %v1776 = vmul.f32 1.0, %v1775
    %v1777 = vrcp.pop %v1759
    %v1778 = vmul.f32 %v1759, %v1777
    %v1779 = vsub.f32 1.0, %v1778
    %v1780 = vmul.f32 %v1777, %v1779
    %v1781 = vadd.f32 %v1777, %v1780
    %vm1782 = vweird.f32 %v1759
    %vm1783 = vweird.f32 %v1777
    %vm1784 = vmor %vm1782, %vm1783
    %v1785 = vsel %vm1784, %v1777, %v1781
    %v1786 = vand.u32 2147483647, %v1759
    %vm1787 = vcmp.eq.f32.partialorder %v1786, 8.507059e+37
    %v1788 = vand.u32 %v1759, 2147483648
    %v1789 = vor.u32 1.1754944e-38, %v1788
    %v1790 = vsel %vm1787, %v1789, %v1785
    %v1791 = vmul.f32 1.0, %v1790
    %v1792 = vrcp.pop %v1760
    %v1793 = vmul.f32 %v1760, %v1792
    %v1794 = vsub.f32 1.0, %v1793
    %v1795 = vmul.f32 %v1792, %v1794
    %v1796 = vadd.f32 %v1792, %v1795
    %vm1797 = vweird.f32 %v1760
    %vm1798 = vweird.f32 %v1792
    %vm1799 = vmor %vm1797, %vm1798
    %v1800 = vsel %vm1799, %v1792, %v1796
    %v1801 = vand.u32 2147483647, %v1760
    %vm1802 = vcmp.eq.f32.partialorder %v1801, 8.507059e+37
    %v1803 = vand.u32 %v1760, 2147483648
    %v1804 = vor.u32 1.1754944e-38, %v1803
    %v1805 = vsel %vm1802, %v1804, %v1800
    %v1806 = vmul.f32 1.0, %v1805
    %v1807 = vrcp.pop %v1761
    %v1808 = vmul.f32 %v1761, %v1807
    %v1809 = vsub.f32 1.0, %v1808
    %v1810 = vmul.f32 %v1807, %v1809
    %v1811 = vadd.f32 %v1807, %v1810
    %vm1812 = vweird.f32 %v1761
    %vm1813 = vweird.f32 %v1807
    %vm1814 = vmor %vm1812, %vm1813
    %v1815 = vsel %vm1814, %v1807, %v1811
    %v1816 = vand.u32 2147483647, %v1761
    %vm1817 = vcmp.eq.f32.partialorder %v1816, 8.507059e+37
    %v1818 = vand.u32 %v1761, 2147483648
    %v1819 = vor.u32 1.1754944e-38, %v1818
    %v1820 = vsel %vm1817, %v1819, %v1815
    %v1821 = vmul.f32 1.0, %v1820
    %v1822 = vmul.f32 %v1776, %v1732
    %v1823 = vmul.f32 %v1791, %v1734
    %v1824 = vmul.f32 %v1806, %v1737
    %v1825 = vmul.f32 %v1821, %v1739
    %v1826 = vpack.c.bf16 %v1822, %v1822
    %v1827 = vpack.c.bf16 %v1823, %v1823
    %v1828 = vpack.c.bf16 %v1824, %v1824
    %v1829 = vpack.c.bf16 %v1825, %v1825
    %v1830 = vpack.c.bf16 %v1776, %v1776
    %v1831 = vpack.c.bf16 %v1791, %v1791
    %v1832 = vpack.c.bf16 %v1806, %v1806
    %v1833 = vpack.c.bf16 %v1821, %v1821
    %v1838 = vunpack.c.l.b16 %v1826
    %v1839 = vunpack.c.l.b16 %v1827
    %v1840 = vunpack.c.l.b16 %v1828
    %v1841 = vunpack.c.l.b16 %v1829
    %v1842 = vpack.c.b16 %v1839, %v1838
    %v1843 = vpack.c.b16 %v1841, %v1840
    %v1850 = vunpack.c.l.b16 %v1830
    %v1851 = vunpack.c.l.b16 %v1831
    %v1852 = vunpack.c.l.b16 %v1832
    %v1853 = vunpack.c.l.b16 %v1833
    %v1854 = vpack.c.b16 %v1851, %v1850
    %v1855 = vpack.c.b16 %v1853, %v1852
    %1858 = vmatpush.bf16.msra.mxu0 0
    %1859 = vmatpush.bf16.msra.mxu0 0
    %1860 = vmatpush.bf16.msra.mxu0 0
    %1861 = vmatpush.bf16.msra.mxu0 0
    %1862 = vmatpush.bf16.msra.mxu0 0
    %1863 = vmatpush.bf16.msra.mxu0 0
    %1864 = vmatpush.bf16.msra.mxu0 %v1843
    %1865 = vmatpush.bf16.msra.mxu0 %v1842
    %1866 = vmatmul.bf16.gmra.mxu0 %v1119
    %v1867 = vpop.f32.mrf.mxu0
    %v1868 = vadd.f32 0.0, %v1867
    %v1869 = vpop.f32.mrf.mxu0
    %v1870 = vadd.f32 0.0, %v1869
    %1871 = vdwg.mxu0
    %1872 = vmatpush.bf16.msra.mxu0 0
    %1873 = vmatpush.bf16.msra.mxu0 0
    %1874 = vmatpush.bf16.msra.mxu0 0
    %1875 = vmatpush.bf16.msra.mxu0 0
    %1876 = vmatpush.bf16.msra.mxu0 0
    %1877 = vmatpush.bf16.msra.mxu0 0
    %1878 = vmatpush.bf16.msra.mxu0 %v1855
    %1879 = vmatpush.bf16.msra.mxu0 %v1854
    %1880 = vmatmul.bf16.gmra.mxu0 %v1119
    %v1881 = vpop.f32.mrf.mxu0
    %v1882 = vadd.f32 0.0, %v1881
    %v1883 = vpop.f32.mrf.mxu0
    %v1884 = vadd.f32 0.0, %v1883
    %1885 = vdwg.mxu0
    %v1886 = vperm.slane %v1299, 0
    %v1903 = vunpack.c.l.b16 %v1282
    %v1904 = vunpack.c.l.b16 %v1283
    %v1905 = vunpack.c.l.b16 %v1284
    %v1906 = vunpack.c.l.b16 %v1285
    %v1907 = vunpack.c.l.b16 %v1286
    %v1908 = vunpack.c.l.b16 %v1287
    %v1909 = vunpack.c.l.b16 %v1288
    %v1910 = vunpack.c.l.b16 %v1289
    %v1911 = vunpack.c.l.b16 %v1290
    %v1912 = vunpack.c.l.b16 %v1291
    %v1913 = vunpack.c.l.b16 %v1292
    %v1914 = vunpack.c.l.b16 %v1293
    %v1915 = vunpack.c.l.b16 %v1294
    %v1916 = vunpack.c.l.b16 %v1295
    %v1917 = vunpack.c.l.b16 %v1296
    %v1918 = vunpack.c.l.b16 %v1297
    %v1919 = vpack.c.b16 %v1904, %v1903
    %v1920 = vpack.c.b16 %v1906, %v1905
    %v1921 = vpack.c.b16 %v1908, %v1907
    %v1922 = vpack.c.b16 %v1910, %v1909
    %v1923 = vpack.c.b16 %v1912, %v1911
    %v1924 = vpack.c.b16 %v1914, %v1913
    %v1925 = vpack.c.b16 %v1916, %v1915
    %v1926 = vpack.c.b16 %v1918, %v1917
    %1935 = vmatpush.bf16.msra.mxu0 %v1926
    %1936 = vmatpush.bf16.msra.mxu0 %v1925
    %1937 = vmatpush.bf16.msra.mxu0 %v1924
    %1938 = vmatpush.bf16.msra.mxu0 %v1923
    %1939 = vmatpush.bf16.msra.mxu0 %v1922
    %1940 = vmatpush.bf16.msra.mxu0 %v1921
    %1941 = vmatpush.bf16.msra.mxu0 %v1920
    %1942 = vmatpush.bf16.msra.mxu0 %v1919
    %1943 = vmatmul.bf16.gmra.mxu0 %v1300
    %v1944 = vpop.f32.mrf.mxu0
    %v1945 = vadd.f32 %v1886, %v1944
    %v1946 = vpop.f32.mrf.mxu0
    %v1947 = vadd.f32 %v1886, %v1946
    %1948 = vdwg.mxu0
    %v1949 = vadd.f32 %v1882, 1e-06
    %v1950 = vadd.f32 %v1884, 1e-06
    %v1951 = vrcp.pop %v1949
    %v1952 = vrcp.pop %v1950
    %v1953 = vmul.f32 %v1868, %v1951
    %v1954 = vmul.f32 %v1870, %v1952
    %v1955 = vadd.f32 %v1945, %v1953
    %v1956 = vadd.f32 %v1947, %v1954
    %v1957 = vmax.f32 %v1955, 0.0
    %v1958 = vmax.f32 %v1956, 0.0
    %v1959 = vadd.f32 %v1222, %v1957
    %v1960 = vadd.f32 %v1223, %v1958
    %v1961 = vmax.f32 %v1742, 0.0
    %v1962 = vmax.f32 %v1743, 0.0
    %v1963 = vmax.f32 %v1744, 0.0
    %v1964 = vmax.f32 %v1745, 0.0
    %v1965 = vadd.f32 %v1228, %v1961
    %v1966 = vadd.f32 %v1229, %v1962
    %v1967 = vadd.f32 %v1230, %v1963
    %v1968 = vadd.f32 %v1231, %v1964
    %v1969 = vpack.c.bf16 %v1959, %v1959
    %v1970 = vpack.c.bf16 %v1960, %v1960
    %v1971 = vpack.c.bf16 %v327, %v327
    %v1972 = vpack.c.bf16 %v329, %v329
    %v1975 = vunpack.c.l.b16 %v1969
    %v1976 = vunpack.c.l.b16 %v1970
    %v1977 = vpack.c.b16 %v1976, %v1975
    %v1981 = vunpack.c.l.b16 %v1971
    %v1982 = vunpack.c.l.b16 %v1972
    %v1983 = vpack.c.b16 %v1982, %v1981
    %v1985 = vld [vmem:[#allocation6] sm:$0xf]
    %v1986 = vld [vmem:[#allocation6 + $0x4] sm:$0xf]
    %v1987 = vld [vmem:[#allocation6 + $0x8] sm:$0xf]
    %v1988 = vld [vmem:[#allocation6 + $0xc] sm:$0xf]
    %v1989 = vld [vmem:[#allocation6 + $0x10] sm:$0xf]
    %v1990 = vld [vmem:[#allocation6 + $0x14] sm:$0xf]
    %v1991 = vld [vmem:[#allocation6 + $0x18] sm:$0xf]
    %v1992 = vld [vmem:[#allocation6 + $0x1c] sm:$0xf]
    %v1993 = vld [vmem:[#allocation6 + $0x20] sm:$0xf]
    %v1994 = vld [vmem:[#allocation6 + $0x24] sm:$0xf]
    %v1995 = vld [vmem:[#allocation6 + $0x28] sm:$0xf]
    %v1996 = vld [vmem:[#allocation6 + $0x2c] sm:$0xf]
    %v1997 = vld [vmem:[#allocation6 + $0x30] sm:$0xf]
    %v1998 = vld [vmem:[#allocation6 + $0x34] sm:$0xf]
    %v1999 = vld [vmem:[#allocation6 + $0x38] sm:$0xf]
    %v2000 = vld [vmem:[#allocation6 + $0x3c] sm:$0xf]
    %v2001 = vld [vmem:[#allocation6 + $0x40] sm:$0xf]
    %v2002 = vld [vmem:[#allocation6 + $0x44] sm:$0xf]
    %v2003 = vld [vmem:[#allocation6 + $0x48] sm:$0xf]
    %v2004 = vld [vmem:[#allocation6 + $0x4c] sm:$0xf]
    %v2005 = vld [vmem:[#allocation6 + $0x50] sm:$0xf]
    %v2006 = vld [vmem:[#allocation6 + $0x54] sm:$0xf]
    %v2007 = vld [vmem:[#allocation6 + $0x58] sm:$0xf]
    %v2008 = vld [vmem:[#allocation6 + $0x5c] sm:$0xf]
    %v2009 = vld [vmem:[#allocation6 + $0x60] sm:$0xf]
    %v2010 = vld [vmem:[#allocation6 + $0x64] sm:$0xf]
    %v2011 = vld [vmem:[#allocation6 + $0x68] sm:$0xf]
    %v2012 = vld [vmem:[#allocation6 + $0x6c] sm:$0xf]
    %v2013 = vld [vmem:[#allocation6 + $0x70] sm:$0xf]
    %v2014 = vld [vmem:[#allocation6 + $0x74] sm:$0xf]
    %v2015 = vld [vmem:[#allocation6 + $0x78] sm:$0xf]
    %v2016 = vld [vmem:[#allocation6 + $0x7c] sm:$0xf]
    %v2017 = vld [vmem:[%s15] sm:$0x1]
    %v2018 = vperm.slane %v2017, 0
    %v2051 = vunpack.c.l.b16 %v1985
    %v2052 = vunpack.c.l.b16 %v1986
    %v2053 = vunpack.c.l.b16 %v1987
    %v2054 = vunpack.c.l.b16 %v1988
    %v2055 = vunpack.c.l.b16 %v1989
    %v2056 = vunpack.c.l.b16 %v1990
    %v2057 = vunpack.c.l.b16 %v1991
    %v2058 = vunpack.c.l.b16 %v1992
    %v2059 = vunpack.c.l.b16 %v1993
    %v2060 = vunpack.c.l.b16 %v1994
    %v2061 = vunpack.c.l.b16 %v1995
    %v2062 = vunpack.c.l.b16 %v1996
    %v2063 = vunpack.c.l.b16 %v1997
    %v2064 = vunpack.c.l.b16 %v1998
    %v2065 = vunpack.c.l.b16 %v1999
    %v2066 = vunpack.c.l.b16 %v2000
    %v2067 = vunpack.c.l.b16 %v2001
    %v2068 = vunpack.c.l.b16 %v2002
    %v2069 = vunpack.c.l.b16 %v2003
    %v2070 = vunpack.c.l.b16 %v2004
    %v2071 = vunpack.c.l.b16 %v2005
    %v2072 = vunpack.c.l.b16 %v2006
    %v2073 = vunpack.c.l.b16 %v2007
    %v2074 = vunpack.c.l.b16 %v2008
    %v2075 = vunpack.c.l.b16 %v2009
    %v2076 = vunpack.c.l.b16 %v2010
    %v2077 = vunpack.c.l.b16 %v2011
    %v2078 = vunpack.c.l.b16 %v2012
    %v2079 = vunpack.c.l.b16 %v2013
    %v2080 = vunpack.c.l.b16 %v2014
    %v2081 = vunpack.c.l.b16 %v2015
    %v2082 = vunpack.c.l.b16 %v2016
    %v2083 = vpack.c.b16 %v2052, %v2051
    %v2084 = vpack.c.b16 %v2054, %v2053
    %v2085 = vpack.c.b16 %v2056, %v2055
    %v2086 = vpack.c.b16 %v2058, %v2057
    %v2087 = vpack.c.b16 %v2060, %v2059
    %v2088 = vpack.c.b16 %v2062, %v2061
    %v2089 = vpack.c.b16 %v2064, %v2063
    %v2090 = vpack.c.b16 %v2066, %v2065
    %v2091 = vpack.c.b16 %v2068, %v2067
    %v2092 = vpack.c.b16 %v2070, %v2069
    %v2093 = vpack.c.b16 %v2072, %v2071
    %v2094 = vpack.c.b16 %v2074, %v2073
    %v2095 = vpack.c.b16 %v2076, %v2075
    %v2096 = vpack.c.b16 %v2078, %v2077
    %v2097 = vpack.c.b16 %v2080, %v2079
    %v2098 = vpack.c.b16 %v2082, %v2081
    %2115 = vmatpush.bf16.msra.mxu0 %v2090
    %2116 = vmatpush.bf16.msra.mxu0 %v2089
    %2117 = vmatpush.bf16.msra.mxu0 %v2088
    %2118 = vmatpush.bf16.msra.mxu0 %v2087
    %2119 = vmatpush.bf16.msra.mxu0 %v2086
    %2120 = vmatpush.bf16.msra.mxu0 %v2085
    %2121 = vmatpush.bf16.msra.mxu0 %v2084
    %2122 = vmatpush.bf16.msra.mxu0 %v2083
    %2123 = vmatmul.bf16.gmra.mxu0 %v1977
    %v2124 = vpop.f32.mrf.mxu0
    %v2125 = vadd.f32 %v2018, %v2124
    %v2126 = vpop.f32.mrf.mxu0
    %v2127 = vadd.f32 %v2018, %v2126
    %2128 = vdwg.mxu0
    %2129 = vmatpush.bf16.msra.mxu0 %v2098
    %2130 = vmatpush.bf16.msra.mxu0 %v2097
    %2131 = vmatpush.bf16.msra.mxu0 %v2096
    %2132 = vmatpush.bf16.msra.mxu0 %v2095
    %2133 = vmatpush.bf16.msra.mxu0 %v2094
    %2134 = vmatpush.bf16.msra.mxu0 %v2093
    %2135 = vmatpush.bf16.msra.mxu0 %v2092
    %2136 = vmatpush.bf16.msra.mxu0 %v2091
    %2137 = vmatmul.bf16.gmra.mxu0 %v1983
    %v2138 = vpop.f32.mrf.mxu0
    %v2139 = vadd.f32 %v2125, %v2138
    %v2140 = vpop.f32.mrf.mxu0
    %v2141 = vadd.f32 %v2127, %v2140
    %2142 = vdwg.mxu0
    %v2143 = vmax.f32 %v2139, 0.0
    %v2144 = vmax.f32 %v2141, 0.0
    %v2145 = vpack.c.bf16 %v2144, %v2143
    %v2146 = vld [vmem:[#allocation7] sm:$0xf]
    %v2147 = vld [vmem:[#allocation7 + $0x4] sm:$0xf]
    %v2148 = vld [vmem:[#allocation7 + $0x8] sm:$0xf]
    %v2149 = vld [vmem:[#allocation7 + $0xc] sm:$0xf]
    %v2150 = vld [vmem:[#allocation7 + $0x10] sm:$0xf]
    %v2151 = vld [vmem:[#allocation7 + $0x14] sm:$0xf]
    %v2152 = vld [vmem:[#allocation7 + $0x18] sm:$0xf]
    %v2153 = vld [vmem:[#allocation7 + $0x1c] sm:$0xf]
    %v2154 = vld [vmem:[#allocation7 + $0x20] sm:$0xf]
    %v2155 = vld [vmem:[#allocation7 + $0x24] sm:$0xf]
    %v2156 = vld [vmem:[#allocation7 + $0x28] sm:$0xf]
    %v2157 = vld [vmem:[#allocation7 + $0x2c] sm:$0xf]
    %v2158 = vld [vmem:[#allocation7 + $0x30] sm:$0xf]
    %v2159 = vld [vmem:[#allocation7 + $0x34] sm:$0xf]
    %v2160 = vld [vmem:[#allocation7 + $0x38] sm:$0xf]
    %v2161 = vld [vmem:[#allocation7 + $0x3c] sm:$0xf]
    %v2162 = vld [vmem:[%s15 + $0x1] sm:$0x1]
    %v2163 = vperm.slane %v2162, 0
    %v2180 = vunpack.c.l.b16 %v2146
    %v2181 = vunpack.c.l.b16 %v2147
    %v2182 = vunpack.c.l.b16 %v2148
    %v2183 = vunpack.c.l.b16 %v2149
    %v2184 = vunpack.c.l.b16 %v2150
    %v2185 = vunpack.c.l.b16 %v2151
    %v2186 = vunpack.c.l.b16 %v2152
    %v2187 = vunpack.c.l.b16 %v2153
    %v2188 = vunpack.c.l.b16 %v2154
    %v2189 = vunpack.c.l.b16 %v2155
    %v2190 = vunpack.c.l.b16 %v2156
    %v2191 = vunpack.c.l.b16 %v2157
    %v2192 = vunpack.c.l.b16 %v2158
    %v2193 = vunpack.c.l.b16 %v2159
    %v2194 = vunpack.c.l.b16 %v2160
    %v2195 = vunpack.c.l.b16 %v2161
    %v2196 = vpack.c.b16 %v2181, %v2180
    %v2197 = vpack.c.b16 %v2183, %v2182
    %v2198 = vpack.c.b16 %v2185, %v2184
    %v2199 = vpack.c.b16 %v2187, %v2186
    %v2200 = vpack.c.b16 %v2189, %v2188
    %v2201 = vpack.c.b16 %v2191, %v2190
    %v2202 = vpack.c.b16 %v2193, %v2192
    %v2203 = vpack.c.b16 %v2195, %v2194
    %2212 = vmatpush.bf16.msra.mxu0 %v2203
    %2213 = vmatpush.bf16.msra.mxu0 %v2202
    %2214 = vmatpush.bf16.msra.mxu0 %v2201
    %2215 = vmatpush.bf16.msra.mxu0 %v2200
    %2216 = vmatpush.bf16.msra.mxu0 %v2199
    %2217 = vmatpush.bf16.msra.mxu0 %v2198
    %2218 = vmatpush.bf16.msra.mxu0 %v2197
    %2219 = vmatpush.bf16.msra.mxu0 %v2196
    %2220 = vmatmul.bf16.gmra.mxu0 %v2145
    %v2221 = vpop.f32.mrf.mxu0
    %v2222 = vadd.f32 %v2163, %v2221
    %v2223 = vpop.f32.mrf.mxu0
    %v2224 = vadd.f32 %v2163, %v2223
    %2225 = vdwg.mxu0
    %v2226 = vmax.f32 %v2222, 0.0
    %v2227 = vmax.f32 %v2224, 0.0
    %v2228 = vpack.c.bf16 %v2227, %v2226
    %v2229 = vld [vmem:[#allocation9] sm:$0xf]
    %v2230 = vld [vmem:[#allocation9 + $0x4] sm:$0xf]
    %v2231 = vld [vmem:[#allocation9 + $0x8] sm:$0xf]
    %v2232 = vld [vmem:[#allocation9 + $0xc] sm:$0xf]
    %v2233 = vld [vmem:[#allocation9 + $0x10] sm:$0xf]
    %v2234 = vld [vmem:[#allocation9 + $0x14] sm:$0xf]
    %v2235 = vld [vmem:[#allocation9 + $0x18] sm:$0xf]
    %v2236 = vld [vmem:[#allocation9 + $0x1c] sm:$0xf]
    %v2237 = vld [vmem:[#allocation9 + $0x20] sm:$0xf]
    %v2238 = vld [vmem:[#allocation9 + $0x24] sm:$0xf]
    %v2239 = vld [vmem:[#allocation9 + $0x28] sm:$0xf]
    %v2240 = vld [vmem:[#allocation9 + $0x2c] sm:$0xf]
    %v2241 = vld [vmem:[#allocation9 + $0x30] sm:$0xf]
    %v2242 = vld [vmem:[#allocation9 + $0x34] sm:$0xf]
    %v2243 = vld [vmem:[#allocation9 + $0x38] sm:$0xf]
    %v2244 = vld [vmem:[#allocation9 + $0x3c] sm:$0xf]
    %v2245 = vld [vmem:[%s15 + $0x2] sm:$0x1]
    %v2246 = vperm.slane %v2245, 0
    %v2263 = vunpack.c.l.b16 %v2229
    %v2264 = vunpack.c.l.b16 %v2230
    %v2265 = vunpack.c.l.b16 %v2231
    %v2266 = vunpack.c.l.b16 %v2232
    %v2267 = vunpack.c.l.b16 %v2233
    %v2268 = vunpack.c.l.b16 %v2234
    %v2269 = vunpack.c.l.b16 %v2235
    %v2270 = vunpack.c.l.b16 %v2236
    %v2271 = vunpack.c.l.b16 %v2237
    %v2272 = vunpack.c.l.b16 %v2238
    %v2273 = vunpack.c.l.b16 %v2239
    %v2274 = vunpack.c.l.b16 %v2240
    %v2275 = vunpack.c.l.b16 %v2241
    %v2276 = vunpack.c.l.b16 %v2242
    %v2277 = vunpack.c.l.b16 %v2243
    %v2278 = vunpack.c.l.b16 %v2244
    %v2279 = vpack.c.b16 %v2264, %v2263
    %v2280 = vpack.c.b16 %v2266, %v2265
    %v2281 = vpack.c.b16 %v2268, %v2267
    %v2282 = vpack.c.b16 %v2270, %v2269
    %v2283 = vpack.c.b16 %v2272, %v2271
    %v2284 = vpack.c.b16 %v2274, %v2273
    %v2285 = vpack.c.b16 %v2276, %v2275
    %v2286 = vpack.c.b16 %v2278, %v2277
    %2295 = vmatpush.bf16.msra.mxu0 %v2286
    %2296 = vmatpush.bf16.msra.mxu0 %v2285
    %2297 = vmatpush.bf16.msra.mxu0 %v2284
    %2298 = vmatpush.bf16.msra.mxu0 %v2283
    %2299 = vmatpush.bf16.msra.mxu0 %v2282
    %2300 = vmatpush.bf16.msra.mxu0 %v2281
    %2301 = vmatpush.bf16.msra.mxu0 %v2280
    %2302 = vmatpush.bf16.msra.mxu0 %v2279
    %2303 = vmatmul.bf16.gmra.mxu0 %v2228
    %v2304 = vpop.f32.mrf.mxu0
    %v2305 = vadd.f32 %v2246, %v2304
    %v2306 = vpop.f32.mrf.mxu0
    %v2307 = vadd.f32 %v2246, %v2306
    %2308 = vdwg.mxu0
    %2309 = vst [vmem:[%s20] sm:$0xff] %v2305
    %2310 = vst [vmem:[%s20 + $0x8] sm:$0xff] %v2307
    %v2311 = vpack.c.bf16 %v1966, %v1965
    %v2312 = vpack.c.bf16 %v1968, %v1967
    %v2313 = vld [vmem:[#allocation10] sm:$0xf]
    %v2314 = vld [vmem:[#allocation10 + $0x4] sm:$0xf]
    %v2315 = vld [vmem:[#allocation10 + $0x8] sm:$0xf]
    %v2316 = vld [vmem:[#allocation10 + $0xc] sm:$0xf]
    %v2317 = vld [vmem:[#allocation10 + $0x10] sm:$0xf]
    %v2318 = vld [vmem:[#allocation10 + $0x14] sm:$0xf]
    %v2319 = vld [vmem:[#allocation10 + $0x18] sm:$0xf]
    %v2320 = vld [vmem:[#allocation10 + $0x1c] sm:$0xf]
    %v2321 = vld [vmem:[#allocation10 + $0x20] sm:$0xf]
    %v2322 = vld [vmem:[#allocation10 + $0x24] sm:$0xf]
    %v2323 = vld [vmem:[#allocation10 + $0x28] sm:$0xf]
    %v2324 = vld [vmem:[#allocation10 + $0x2c] sm:$0xf]
    %v2325 = vld [vmem:[#allocation10 + $0x30] sm:$0xf]
    %v2326 = vld [vmem:[#allocation10 + $0x34] sm:$0xf]
    %v2327 = vld [vmem:[#allocation10 + $0x38] sm:$0xf]
    %v2328 = vld [vmem:[#allocation10 + $0x3c] sm:$0xf]
    %v2329 = vld [vmem:[%s19] sm:$0x1]
    %v2330 = vperm.slane %v2329, 0
    %v2347 = vunpack.c.l.b16 %v2313
    %v2348 = vunpack.c.l.b16 %v2314
    %v2349 = vunpack.c.l.b16 %v2315
    %v2350 = vunpack.c.l.b16 %v2316
    %v2351 = vunpack.c.l.b16 %v2317
    %v2352 = vunpack.c.l.b16 %v2318
    %v2353 = vunpack.c.l.b16 %v2319
    %v2354 = vunpack.c.l.b16 %v2320
    %v2355 = vunpack.c.l.b16 %v2321
    %v2356 = vunpack.c.l.b16 %v2322
    %v2357 = vunpack.c.l.b16 %v2323
    %v2358 = vunpack.c.l.b16 %v2324
    %v2359 = vunpack.c.l.b16 %v2325
    %v2360 = vunpack.c.l.b16 %v2326
    %v2361 = vunpack.c.l.b16 %v2327
    %v2362 = vunpack.c.l.b16 %v2328
    %v2363 = vpack.c.b16 %v2348, %v2347
    %v2364 = vpack.c.b16 %v2350, %v2349
    %v2365 = vpack.c.b16 %v2352, %v2351
    %v2366 = vpack.c.b16 %v2354, %v2353
    %v2367 = vpack.c.b16 %v2356, %v2355
    %v2368 = vpack.c.b16 %v2358, %v2357
    %v2369 = vpack.c.b16 %v2360, %v2359
    %v2370 = vpack.c.b16 %v2362, %v2361
    %2379 = vmatpush.bf16.msra.mxu0 %v2370
    %2380 = vmatpush.bf16.msra.mxu0 %v2369
    %2381 = vmatpush.bf16.msra.mxu0 %v2368
    %2382 = vmatpush.bf16.msra.mxu0 %v2367
    %2383 = vmatpush.bf16.msra.mxu0 %v2366
    %2384 = vmatpush.bf16.msra.mxu0 %v2365
    %2385 = vmatpush.bf16.msra.mxu0 %v2364
    %2386 = vmatpush.bf16.msra.mxu0 %v2363
    %2387 = vmatmul.bf16.gmra.mxu0 %v2311
    %v2388 = vpop.f32.mrf.mxu0
    %v2389 = vadd.f32 %v2330, %v2388
    %v2390 = vpop.f32.mrf.mxu0
    %v2391 = vadd.f32 %v2330, %v2390
    %2392 = vmatmul.bf16.gmra.mxu0 %v2312
    %v2393 = vpop.f32.mrf.mxu0
    %v2394 = vadd.f32 %v2330, %v2393
    %v2395 = vpop.f32.mrf.mxu0
    %v2396 = vadd.f32 %v2330, %v2395
    %2397 = vdwg.mxu0
    %v2398 = vmax.f32 %v2389, 0.0
    %v2399 = vmax.f32 %v2391, 0.0
    %v2400 = vmax.f32 %v2394, 0.0
    %v2401 = vmax.f32 %v2396, 0.0
    %v2402 = vpack.c.bf16 %v2399, %v2398
    %v2403 = vpack.c.bf16 %v2401, %v2400
    %v2404 = vld [vmem:[#allocation12] sm:$0xf]
    %v2405 = vld [vmem:[#allocation12 + $0x4] sm:$0xf]
    %v2406 = vld [vmem:[#allocation12 + $0x8] sm:$0xf]
    %v2407 = vld [vmem:[#allocation12 + $0xc] sm:$0xf]
    %v2408 = vld [vmem:[#allocation12 + $0x10] sm:$0xf]
    %v2409 = vld [vmem:[#allocation12 + $0x14] sm:$0xf]
    %v2410 = vld [vmem:[#allocation12 + $0x18] sm:$0xf]
    %v2411 = vld [vmem:[#allocation12 + $0x1c] sm:$0xf]
    %v2412 = vld [vmem:[#allocation12 + $0x20] sm:$0xf]
    %v2413 = vld [vmem:[#allocation12 + $0x24] sm:$0xf]
    %v2414 = vld [vmem:[#allocation12 + $0x28] sm:$0xf]
    %v2415 = vld [vmem:[#allocation12 + $0x2c] sm:$0xf]
    %v2416 = vld [vmem:[#allocation12 + $0x30] sm:$0xf]
    %v2417 = vld [vmem:[#allocation12 + $0x34] sm:$0xf]
    %v2418 = vld [vmem:[#allocation12 + $0x38] sm:$0xf]
    %v2419 = vld [vmem:[#allocation12 + $0x3c] sm:$0xf]
    %v2420 = vld [vmem:[%s19 + $0x1] sm:$0x1]
    %v2421 = vperm.slane %v2420, 0
    %v2438 = vunpack.c.l.b16 %v2404
    %v2439 = vunpack.c.l.b16 %v2405
    %v2440 = vunpack.c.l.b16 %v2406
    %v2441 = vunpack.c.l.b16 %v2407
    %v2442 = vunpack.c.l.b16 %v2408
    %v2443 = vunpack.c.l.b16 %v2409
    %v2444 = vunpack.c.l.b16 %v2410
    %v2445 = vunpack.c.l.b16 %v2411
    %v2446 = vunpack.c.l.b16 %v2412
    %v2447 = vunpack.c.l.b16 %v2413
    %v2448 = vunpack.c.l.b16 %v2414
    %v2449 = vunpack.c.l.b16 %v2415
    %v2450 = vunpack.c.l.b16 %v2416
    %v2451 = vunpack.c.l.b16 %v2417
    %v2452 = vunpack.c.l.b16 %v2418
    %v2453 = vunpack.c.l.b16 %v2419
    %v2454 = vpack.c.b16 %v2439, %v2438
    %v2455 = vpack.c.b16 %v2441, %v2440
    %v2456 = vpack.c.b16 %v2443, %v2442
    %v2457 = vpack.c.b16 %v2445, %v2444
    %v2458 = vpack.c.b16 %v2447, %v2446
    %v2459 = vpack.c.b16 %v2449, %v2448
    %v2460 = vpack.c.b16 %v2451, %v2450
    %v2461 = vpack.c.b16 %v2453, %v2452
    %2470 = vmatpush.bf16.msra.mxu0 %v2461
    %2471 = vmatpush.bf16.msra.mxu0 %v2460
    %2472 = vmatpush.bf16.msra.mxu0 %v2459
    %2473 = vmatpush.bf16.msra.mxu0 %v2458
    %2474 = vmatpush.bf16.msra.mxu0 %v2457
    %2475 = vmatpush.bf16.msra.mxu0 %v2456
    %2476 = vmatpush.bf16.msra.mxu0 %v2455
    %2477 = vmatpush.bf16.msra.mxu0 %v2454
    %2478 = vmatmul.bf16.gmra.mxu0 %v2402
    %v2479 = vpop.f32.mrf.mxu0
    %v2480 = vadd.f32 %v2421, %v2479
    %v2481 = vpop.f32.mrf.mxu0
    %v2482 = vadd.f32 %v2421, %v2481
    %2483 = vmatmul.bf16.gmra.mxu0 %v2403
    %v2484 = vpop.f32.mrf.mxu0
    %v2485 = vadd.f32 %v2421, %v2484
    %v2486 = vpop.f32.mrf.mxu0
    %v2487 = vadd.f32 %v2421, %v2486
    %2488 = vdwg.mxu0
    %v2489 = vmax.f32 %v2480, 0.0
    %v2490 = vmax.f32 %v2482, 0.0
    %v2491 = vmax.f32 %v2485, 0.0
    %v2492 = vmax.f32 %v2487, 0.0
    %v2493 = vpack.c.bf16 %v2490, %v2489
    %v2494 = vpack.c.bf16 %v2492, %v2491
    %v2495 = vld [vmem:[#allocation13] sm:$0xf]
    %v2496 = vld [vmem:[#allocation13 + $0x4] sm:$0xf]
    %v2497 = vld [vmem:[#allocation13 + $0x8] sm:$0xf]
    %v2498 = vld [vmem:[#allocation13 + $0xc] sm:$0xf]
    %v2499 = vld [vmem:[#allocation13 + $0x10] sm:$0xf]
    %v2500 = vld [vmem:[#allocation13 + $0x14] sm:$0xf]
    %v2501 = vld [vmem:[#allocation13 + $0x18] sm:$0xf]
    %v2502 = vld [vmem:[#allocation13 + $0x1c] sm:$0xf]
    %v2503 = vld [vmem:[#allocation13 + $0x20] sm:$0xf]
    %v2504 = vld [vmem:[#allocation13 + $0x24] sm:$0xf]
    %v2505 = vld [vmem:[#allocation13 + $0x28] sm:$0xf]
    %v2506 = vld [vmem:[#allocation13 + $0x2c] sm:$0xf]
    %v2507 = vld [vmem:[#allocation13 + $0x30] sm:$0xf]
    %v2508 = vld [vmem:[#allocation13 + $0x34] sm:$0xf]
    %v2509 = vld [vmem:[#allocation13 + $0x38] sm:$0xf]
    %v2510 = vld [vmem:[#allocation13 + $0x3c] sm:$0xf]
    %v2511 = vld [vmem:[%s19 + $0x2] sm:$0x1]
    %v2512 = vperm.slane %v2511, 0
    %v2529 = vunpack.c.l.b16 %v2495
    %v2530 = vunpack.c.l.b16 %v2496
    %v2531 = vunpack.c.l.b16 %v2497
    %v2532 = vunpack.c.l.b16 %v2498
    %v2533 = vunpack.c.l.b16 %v2499
    %v2534 = vunpack.c.l.b16 %v2500
    %v2535 = vunpack.c.l.b16 %v2501
    %v2536 = vunpack.c.l.b16 %v2502
    %v2537 = vunpack.c.l.b16 %v2503
    %v2538 = vunpack.c.l.b16 %v2504
    %v2539 = vunpack.c.l.b16 %v2505
    %v2540 = vunpack.c.l.b16 %v2506
    %v2541 = vunpack.c.l.b16 %v2507
    %v2542 = vunpack.c.l.b16 %v2508
    %v2543 = vunpack.c.l.b16 %v2509
    %v2544 = vunpack.c.l.b16 %v2510
    %v2545 = vpack.c.b16 %v2530, %v2529
    %v2546 = vpack.c.b16 %v2532, %v2531
    %v2547 = vpack.c.b16 %v2534, %v2533
    %v2548 = vpack.c.b16 %v2536, %v2535
    %v2549 = vpack.c.b16 %v2538, %v2537
    %v2550 = vpack.c.b16 %v2540, %v2539
    %v2551 = vpack.c.b16 %v2542, %v2541
    %v2552 = vpack.c.b16 %v2544, %v2543
    %2561 = vmatpush.bf16.msra.mxu0 %v2552
    %2562 = vmatpush.bf16.msra.mxu0 %v2551
    %2563 = vmatpush.bf16.msra.mxu0 %v2550
    %2564 = vmatpush.bf16.msra.mxu0 %v2549
    %2565 = vmatpush.bf16.msra.mxu0 %v2548
    %2566 = vmatpush.bf16.msra.mxu0 %v2547
    %2567 = vmatpush.bf16.msra.mxu0 %v2546
    %2568 = vmatpush.bf16.msra.mxu0 %v2545
    %2569 = vmatmul.bf16.gmra.mxu0 %v2493
    %v2570 = vpop.f32.mrf.mxu0
    %v2571 = vadd.f32 %v2512, %v2570
    %v2572 = vpop.f32.mrf.mxu0
    %v2573 = vadd.f32 %v2512, %v2572
    %2574 = vmatmul.bf16.gmra.mxu0 %v2494
    %v2575 = vpop.f32.mrf.mxu0
    %v2576 = vadd.f32 %v2512, %v2575
    %v2577 = vpop.f32.mrf.mxu0
    %v2578 = vadd.f32 %v2512, %v2577
    %2579 = vdwg.mxu0
    %2580 = vst [vmem:[%s21] sm:$0xff] %v2571
    %2581 = vst [vmem:[%s21 + $0x8] sm:$0xff] %v2573
    %2582 = vst [vmem:[%s21 + $0x10] sm:$0xff] %v2576
    %2583 = vst [vmem:[%s21 + $0x18] sm:$0xff] %v2578
    // Predicated region
    $region114: #{gcn_net_sf_forward.1} parent=1 // pred_check
      _
    $region115: #{gcn_net_sf_forward.1} parent=1 // pred_check_branch
      %2585 = sbr.rel (0) target = $region117
    $region116: #{gcn_net_sf_forward.1} parent=1 // pred_region
      _
    $region117: #{gcn_net_sf_forward.1} parent=1 // pred_fallthru
      _
    // Predicated region
    $region118: #{gcn_net_sf_forward.1} parent=1 // pred_check
      _
    $region119: #{gcn_net_sf_forward.1} parent=1 // pred_check_branch
      %2587 = sbr.rel (0) target = $region121
    $region120: #{gcn_net_sf_forward.1} parent=1 // pred_region
      _
    $region121: #{gcn_net_sf_forward.1} parent=1 // pred_fallthru
      _
    // Predicated region
    $region122: #{gcn_net_sf_forward.1} parent=1 // pred_check
      _
    $region123: #{gcn_net_sf_forward.1} parent=1 // pred_check_branch
      %2589 = sbr.rel (0) target = $region125
    $region124: #{gcn_net_sf_forward.1} parent=1 // pred_region
      _
    $region125: #{gcn_net_sf_forward.1} parent=1 // pred_fallthru
      _
    // Predicated region
    $region126: #{gcn_net_sf_forward.1} parent=1 // pred_check
      _
    $region127: #{gcn_net_sf_forward.1} parent=1 // pred_check_branch
      %2591 = sbr.rel (0) target = $region129
    $region128: #{gcn_net_sf_forward.1} parent=1 // pred_region
      _
    $region129: #{gcn_net_sf_forward.1} parent=1 // pred_fallthru
      _
    %2592 = vsyncpa [#allocation3], 1
    %2593 = vsyncpa [#allocation5], 1
    %2594 = vsyncpa [#allocation8], 1
    %2595 = vsyncpa [#allocation11], 1
    %2596 = vsyncpa [#allocation14], 1

</llo_original>
